<compile_context>
chip_gen: v7x
topology: tpu7x:2x2x1
jax: 0.10.0
libtpu: 0.0.40
codegen_flags: <defaults>
</compile_context>

<pallas_src>
import math

import jax
import jax.numpy as jnp
from jax.experimental import pallas as pl
from jax.experimental.pallas import tpu as pltpu


def make_srgnn_kernel(num_layers: int, hidden: int):
    H = hidden
    BF = jnp.bfloat16
    F32 = jnp.float32

    def kernel(emb_ref, A_ref, P_ref, S_ref, L_ref,
               Wf_ref, Whh_ref, Wmisc_ref, bias_ref, out_ref):
        x = emb_ref[...]                  # [N, H] f32 node embeddings
        A = A_ref[...]                    # [N, N] bf16 (0/1 edge counts, exact)

        # Bias rows (loaded once; broadcast against [N, H]).
        b_r   = bias_ref[0:1, :]          # bih_r + bhh_r
        b_z   = bias_ref[1:2, :]          # bih_z + bhh_z
        bih_n = bias_ref[2:3, :]          # n-gate input bias (outside r*)
        bhh_n = bias_ref[3:4, :]          # n-gate hidden bias (inside r*)
        b12   = bias_ref[4:5, :]          # b1 + b2
        qw    = bias_ref[5:6, :]
        b3    = bias_ref[6:7, :]
        qb    = bias_ref[7:8, 0:1]        # scalar, kept 2-D

        # GRU hidden weights are shared across layers -> load once.
        whh_r = Whh_ref[0]
        whh_z = Whh_ref[1]
        whh_n = Whh_ref[2]

        # ---- GatedGraphConv: num_layers x (propagate + GRUCell update) ----
        for l in range(num_layers):
            xb = x.astype(BF)
            # A @ (x @ Wgg_l) @ Wih.T == (A @ x) @ (Wgg_l @ Wih.T); the fused
            # per-gate [H,H] weights are built in the wrapper.
            ax = jnp.dot(A, xb, preferred_element_type=F32).astype(BF)        # [N, H]
            gi_r = jnp.dot(ax, Wf_ref[3 * l + 0], preferred_element_type=F32)
            gi_z = jnp.dot(ax, Wf_ref[3 * l + 1], preferred_element_type=F32)
            gi_n = jnp.dot(ax, Wf_ref[3 * l + 2], preferred_element_type=F32)
            gh_r = jnp.dot(xb, whh_r, preferred_element_type=F32)
            gh_z = jnp.dot(xb, whh_z, preferred_element_type=F32)
            gh_n = jnp.dot(xb, whh_n, preferred_element_type=F32)
            r = jax.nn.sigmoid(gi_r + gh_r + b_r)
            z = jax.nn.sigmoid(gi_z + gh_z + b_z)
            n = jnp.tanh(gi_n + bih_n + r * (gh_n + bhh_n))
            x = (1.0 - z) * n + z * x

        h = jnp.maximum(x, 0.0)           # ReLU (GNNModel output), f32
        hb = h.astype(BF)

        # ---- Embedding2Score ----
        v_n = jnp.dot(L_ref[...], hb, preferred_element_type=F32)             # [B, H] last node / graph
        vnb = v_n.astype(BF)
        # W_1 applied to the B graph vectors, then scattered to nodes:
        # P @ (v_n @ W1^T) == (P @ v_n) @ W1^T  (linearity) — saves (N-B)*H^2 MACs.
        vn_w1 = jnp.dot(vnb, Wmisc_ref[0], preferred_element_type=F32).astype(BF)  # [B, H]
        pre = (jnp.dot(P_ref[...], vn_w1, preferred_element_type=F32)
               + jnp.dot(hb, Wmisc_ref[1], preferred_element_type=F32) + b12)      # [N, H]
        # q: Linear(H, 1) as a lane reduction (avoids a width-1 matmul)
        alpha = jnp.sum(jax.nn.sigmoid(pre) * qw, axis=-1, keepdims=True) + qb     # [N, 1]
        s_g = jnp.dot(S_ref[...], (alpha * h).astype(BF),
                      preferred_element_type=F32)                                  # [B, H]
        s_h = (jnp.dot(vnb, Wmisc_ref[2], preferred_element_type=F32)
               + jnp.dot(s_g.astype(BF), Wmisc_ref[3], preferred_element_type=F32)
               + b3)
        out_ref[...] = s_h

    return kernel


def init_params(key, hidden, n_node, num_layers):
    stdv = 1.0 / math.sqrt(hidden)

    def u(k, shape):
        return jax.random.uniform(k, shape, jnp.float32, minval=-stdv, maxval=stdv)

    ks = jax.random.split(key, 14)
    return {
        "emb_table": u(ks[0], (n_node, hidden)),
        "Wgg":       u(ks[1], (num_layers, hidden, hidden)),
        "gru_wih":   u(ks[2], (3 * hidden, hidden)),
        "gru_whh":   u(ks[3], (3 * hidden, hidden)),
        "gru_bih":   u(ks[4], (3 * hidden,)),
        "gru_bhh":   u(ks[5], (3 * hidden,)),
        "W1":        u(ks[6], (hidden, hidden)),
        "b1":        u(ks[7], (hidden,)),
        "W2":        u(ks[8], (hidden, hidden)),
        "b2":        u(ks[9], (hidden,)),
        "q_w":       u(ks[10], (1, hidden)),
        "q_b":       u(ks[11], (1,)),
        "W3":        u(ks[12], (hidden, 2 * hidden)),
        "b3":        u(ks[13], (hidden,)),
    }


def srgnn_forward(params, x_idx, edge_index, batch, num_graphs, num_layers):
    N = x_idx.shape[0]
    H = params["emb_table"].shape[1]
    B = num_graphs
    BF = jnp.bfloat16

    # ---- JAX glue: embedding lookup + operator matrices ----
    # TODO(synk): fuse this gather into the kernel (scalar-prefetch x_idx +
    # pl.Element row BlockSpec) to avoid the extra [N, H] HBM round-trip.
    emb = jnp.take(params["emb_table"], x_idx, axis=0).astype(jnp.float32)   # [N, H]

    src, dst = edge_index[0], edge_index[1]
    # TODO(synk): for large N replace this dense O(N^2) propagate operator with an
    # edge-list / segment-sum formulation + row-tiled grid (megacore on v7x).
    A = jnp.zeros((N, N), jnp.float32).at[dst, src].add(1.0).astype(BF)      # aggr='add', src->dst

    # NOTE: assumes `batch` is sorted with each graph's nodes contiguous (PyG
    # layout) so cumsum(bincount)-1 is the "last node" of each session, matching
    # torch.split semantics in the reference.
    sections = jnp.bincount(batch, length=B)
    last_idx = jnp.cumsum(sections) - 1
    P = jax.nn.one_hot(batch, B, dtype=BF)                                   # [N, B] graph->node scatter
    S = P.T                                                                  # [B, N] per-graph sum
    L = jax.nn.one_hot(last_idx, N, dtype=BF)                                # [B, N] last-node select

    # nn.Linear uses y = x @ W.T + b ; pre-transpose, fuse, and split per gate.
    WihT = params["gru_wih"].T                                               # [H, 3H] (r|z|n cols)
    WhhT = params["gru_whh"].T                                               # [H, 3H]
    Wf = jnp.einsum("lij,jk->lik", params["Wgg"], WihT)                      # fused Wgg_l @ Wih.T
    Wf = (Wf.reshape(num_layers, H, 3, H).transpose(0, 2, 1, 3)
            .reshape(num_layers * 3, H, H).astype(BF))                       # [3L, H, H]
    Whh = WhhT.reshape(H, 3, H).transpose(1, 0, 2).astype(BF)                # [3, H, H]

    bih, bhh = params["gru_bih"], params["gru_bhh"]
    bias_pack = jnp.stack([
        bih[0:H] + bhh[0:H],                       # r-gate bias
        bih[H:2 * H] + bhh[H:2 * H],               # z-gate bias
        bih[2 * H:3 * H],                          # n-gate input bias
        bhh[2 * H:3 * H],                          # n-gate hidden bias
        params["b1"] + params["b2"],
        params["q_w"][0],
        params["b3"],
        jnp.full((H,), params["q_b"][0], jnp.float32),
    ], axis=0).astype(jnp.float32)                 # [8, H]

    W3T = params["W3"].T                                                     # [2H, H]
    Wmisc = jnp.stack([params["W1"].T, params["W2"].T,
                       W3T[:H, :], W3T[H:, :]], axis=0).astype(BF)           # [4, H, H]

    kernel = make_srgnn_kernel(num_layers, H)
    vm = pl.BlockSpec(memory_space=pltpu.MemorySpace.VMEM)

    # Scoped-VMEM sizing for the whole-problem-resident design (+ padding to
    # (8,128)/(16,128) tiles, 2x for double-buffered input copies, headroom for
    # intermediates), capped at v7x's 64 MiB physical VMEM per TensorCore.
    def _rup(v, m):
        return -(-v // m) * m
    lanes_H = _rup(H, 128)
    a_bytes = _rup(N, 16) * _rup(N, 128) * 2
    nh_f32 = _rup(N, 8) * lanes_H * 4
    sel_bytes = (_rup(N, 16) * _rup(B, 128) + 2 * _rup(B, 16) * _rup(N, 128)) * 2
    w_bytes = (num_layers * 3 + 3 + 4) * _rup(H, 16) * lanes_H * 2
    vmem_need = 2 * (a_bytes + nh_f32 + sel_bytes + w_bytes) + 16 * nh_f32 + (1 << 20)
    vmem_limit = int(min(max(vmem_need, 32 * 1024 * 1024), 64 * 1024 * 1024))

    flops = (num_layers * (2 * N * N * H + 12 * N * H * H)      # GatedGraphConv
             + 6 * B * N * H + 2 * N * H * H + 6 * B * H * H)   # Embedding2Score
    cost = pl.CostEstimate(
        flops=int(flops),
        transcendentals=int((num_layers * 3 + 1) * N * H),
        bytes_accessed=int(a_bytes + 3 * nh_f32 + sel_bytes + w_bytes),
    )

    return pl.pallas_call(
        kernel,
        out_shape=jax.ShapeDtypeStruct((B, H), jnp.float32),
        in_specs=[vm] * 9,
        out_specs=vm,
        compiler_params=pltpu.CompilerParams(vmem_limit_bytes=vmem_limit),
        cost_estimate=cost,
    )(emb, A, P, S, L, Wf, Whh, Wmisc, bias_pack)


if __name__ == "__main__":
    hidden = 32
    n_node = 50
    num_layers = 2
    N = 10          # total nodes (2 sessions of 5 nodes each)
    B = 2           # graphs in the batch

    key = jax.random.PRNGKey(0)
    pkey, xkey = jax.random.split(key)

    params = init_params(pkey, hidden, n_node, num_layers)

    x_idx = jax.random.randint(xkey, (N,), 0, n_node, dtype=jnp.int32)
    batch = jnp.array([0, 0, 0, 0, 0, 1, 1, 1, 1, 1], dtype=jnp.int32)
    edge_index = jnp.array(
        [[0, 1, 2, 3, 4, 1, 5, 6, 7, 8, 9, 6],   # src
         [1, 2, 3, 4, 0, 3, 6, 7, 8, 9, 5, 8]],  # dst
        dtype=jnp.int32)

    s_h = srgnn_forward(params, x_idx, edge_index, batch, B, num_layers)
    s_h = jax.block_until_ready(s_h)
    assert s_h.shape == (B, hidden)
    print("KERNEL_OK")
</pallas_src>

<mosaic_0001>
module attributes {stable_mosaic.version = 11 : i64} {
  func.func @kernel(%arg0: memref<10x32xf32, #tpu.memory_space<vmem>>, %arg1: memref<10x10xbf16, #tpu.memory_space<vmem>>, %arg2: memref<10x2xbf16, #tpu.memory_space<vmem>>, %arg3: memref<2x10xbf16, #tpu.memory_space<vmem>>, %arg4: memref<2x10xbf16, #tpu.memory_space<vmem>>, %arg5: memref<6x32x32xbf16, #tpu.memory_space<vmem>>, %arg6: memref<3x32x32xbf16, #tpu.memory_space<vmem>>, %arg7: memref<4x32x32xbf16, #tpu.memory_space<vmem>>, %arg8: memref<8x32xf32, #tpu.memory_space<vmem>>, %arg9: memref<2x32xf32, #tpu.memory_space<vmem>>) attributes {dimension_semantics = [], scalar_prefetch = 0 : i64, scratch_operands = 0 : i64, tpu.core_type = #tpu.core_type<tc>} {
    %c0 = arith.constant 0 : index
    %c0_0 = arith.constant 0 : index
    %0 = vector.load %arg0[%c0, %c0_0] : memref<10x32xf32, #tpu.memory_space<vmem>>, vector<10x32xf32>
    %c0_1 = arith.constant 0 : index
    %c0_2 = arith.constant 0 : index
    %1 = vector.load %arg1[%c0_1, %c0_2] : memref<10x10xbf16, #tpu.memory_space<vmem>>, vector<10x10xbf16>
    %c0_3 = arith.constant 0 : index
    %c0_4 = arith.constant 0 : index
    %2 = vector.load %arg8[%c0_3, %c0_4] : memref<8x32xf32, #tpu.memory_space<vmem>>, vector<1x32xf32>
    %c1 = arith.constant 1 : index
    %c0_5 = arith.constant 0 : index
    %3 = vector.load %arg8[%c1, %c0_5] : memref<8x32xf32, #tpu.memory_space<vmem>>, vector<1x32xf32>
    %c2 = arith.constant 2 : index
    %c0_6 = arith.constant 0 : index
    %4 = vector.load %arg8[%c2, %c0_6] : memref<8x32xf32, #tpu.memory_space<vmem>>, vector<1x32xf32>
    %c3 = arith.constant 3 : index
    %c0_7 = arith.constant 0 : index
    %5 = vector.load %arg8[%c3, %c0_7] : memref<8x32xf32, #tpu.memory_space<vmem>>, vector<1x32xf32>
    %c4 = arith.constant 4 : index
    %c0_8 = arith.constant 0 : index
    %6 = vector.load %arg8[%c4, %c0_8] : memref<8x32xf32, #tpu.memory_space<vmem>>, vector<1x32xf32>
    %c5 = arith.constant 5 : index
    %c0_9 = arith.constant 0 : index
    %7 = vector.load %arg8[%c5, %c0_9] : memref<8x32xf32, #tpu.memory_space<vmem>>, vector<1x32xf32>
    %c6 = arith.constant 6 : index
    %c0_10 = arith.constant 0 : index
    %8 = vector.load %arg8[%c6, %c0_10] : memref<8x32xf32, #tpu.memory_space<vmem>>, vector<1x32xf32>
    %c7 = arith.constant 7 : index
    %c0_11 = arith.constant 0 : index
    %9 = vector.load %arg8[%c7, %c0_11] : memref<8x32xf32, #tpu.memory_space<vmem>>, vector<1x1xf32>
    %c0_12 = arith.constant 0 : index
    %c0_13 = arith.constant 0 : index
    %c0_14 = arith.constant 0 : index
    %10 = vector.load %arg6[%c0_12, %c0_13, %c0_14] : memref<3x32x32xbf16, #tpu.memory_space<vmem>>, vector<1x32x32xbf16>
    %11 = vector.shape_cast %10 : vector<1x32x32xbf16> to vector<32x32xbf16>
    %c1_15 = arith.constant 1 : index
    %c0_16 = arith.constant 0 : index
    %c0_17 = arith.constant 0 : index
    %12 = vector.load %arg6[%c1_15, %c0_16, %c0_17] : memref<3x32x32xbf16, #tpu.memory_space<vmem>>, vector<1x32x32xbf16>
    %13 = vector.shape_cast %12 : vector<1x32x32xbf16> to vector<32x32xbf16>
    %c2_18 = arith.constant 2 : index
    %c0_19 = arith.constant 0 : index
    %c0_20 = arith.constant 0 : index
    %14 = vector.load %arg6[%c2_18, %c0_19, %c0_20] : memref<3x32x32xbf16, #tpu.memory_space<vmem>>, vector<1x32x32xbf16>
    %15 = vector.shape_cast %14 : vector<1x32x32xbf16> to vector<32x32xbf16>
    %16 = arith.truncf %0 : vector<10x32xf32> to vector<10x32xbf16>
    %cst = arith.constant dense<0.000000e+00> : vector<10x32xf32>
    %17 = tpu.matmul %1, %16, %cst {dimension_numbers = #tpu.dot_dimension_numbers<[1], [0], [0], [1], [0, 0, 1, 1], [], []>} : vector<10x10xbf16>, vector<10x32xbf16>, vector<10x32xf32> -> vector<10x32xf32>
    %18 = arith.truncf %17 : vector<10x32xf32> to vector<10x32xbf16>
    %c0_21 = arith.constant 0 : index
    %c0_22 = arith.constant 0 : index
    %c0_23 = arith.constant 0 : index
    %19 = vector.load %arg5[%c0_21, %c0_22, %c0_23] : memref<6x32x32xbf16, #tpu.memory_space<vmem>>, vector<1x32x32xbf16>
    %20 = vector.shape_cast %19 : vector<1x32x32xbf16> to vector<32x32xbf16>
    %cst_24 = arith.constant dense<0.000000e+00> : vector<10x32xf32>
    %21 = tpu.matmul %18, %20, %cst_24 {dimension_numbers = #tpu.dot_dimension_numbers<[1], [0], [0], [1], [0, 0, 1, 1], [], []>} : vector<10x32xbf16>, vector<32x32xbf16>, vector<10x32xf32> -> vector<10x32xf32>
    %c1_25 = arith.constant 1 : index
    %c0_26 = arith.constant 0 : index
    %c0_27 = arith.constant 0 : index
    %22 = vector.load %arg5[%c1_25, %c0_26, %c0_27] : memref<6x32x32xbf16, #tpu.memory_space<vmem>>, vector<1x32x32xbf16>
    %23 = vector.shape_cast %22 : vector<1x32x32xbf16> to vector<32x32xbf16>
    %cst_28 = arith.constant dense<0.000000e+00> : vector<10x32xf32>
    %24 = tpu.matmul %18, %23, %cst_28 {dimension_numbers = #tpu.dot_dimension_numbers<[1], [0], [0], [1], [0, 0, 1, 1], [], []>} : vector<10x32xbf16>, vector<32x32xbf16>, vector<10x32xf32> -> vector<10x32xf32>
    %c2_29 = arith.constant 2 : index
    %c0_30 = arith.constant 0 : index
    %c0_31 = arith.constant 0 : index
    %25 = vector.load %arg5[%c2_29, %c0_30, %c0_31] : memref<6x32x32xbf16, #tpu.memory_space<vmem>>, vector<1x32x32xbf16>
    %26 = vector.shape_cast %25 : vector<1x32x32xbf16> to vector<32x32xbf16>
    %cst_32 = arith.constant dense<0.000000e+00> : vector<10x32xf32>
    %27 = tpu.matmul %18, %26, %cst_32 {dimension_numbers = #tpu.dot_dimension_numbers<[1], [0], [0], [1], [0, 0, 1, 1], [], []>} : vector<10x32xbf16>, vector<32x32xbf16>, vector<10x32xf32> -> vector<10x32xf32>
    %cst_33 = arith.constant dense<0.000000e+00> : vector<10x32xf32>
    %28 = tpu.matmul %16, %11, %cst_33 {dimension_numbers = #tpu.dot_dimension_numbers<[1], [0], [0], [1], [0, 0, 1, 1], [], []>} : vector<10x32xbf16>, vector<32x32xbf16>, vector<10x32xf32> -> vector<10x32xf32>
    %cst_34 = arith.constant dense<0.000000e+00> : vector<10x32xf32>
    %29 = tpu.matmul %16, %13, %cst_34 {dimension_numbers = #tpu.dot_dimension_numbers<[1], [0], [0], [1], [0, 0, 1, 1], [], []>} : vector<10x32xbf16>, vector<32x32xbf16>, vector<10x32xf32> -> vector<10x32xf32>
    %cst_35 = arith.constant dense<0.000000e+00> : vector<10x32xf32>
    %30 = tpu.matmul %16, %15, %cst_35 {dimension_numbers = #tpu.dot_dimension_numbers<[1], [0], [0], [1], [0, 0, 1, 1], [], []>} : vector<10x32xbf16>, vector<32x32xbf16>, vector<10x32xf32> -> vector<10x32xf32>
    %31 = arith.addf %21, %28 : vector<10x32xf32>
    %32 = vector.broadcast %2 : vector<1x32xf32> to vector<10x32xf32>
    %33 = arith.addf %31, %32 : vector<10x32xf32>
    %34 = arith.negf %33 : vector<10x32xf32>
    %35 = math.exp %34 : vector<10x32xf32>
    %cst_36 = arith.constant 1.000000e+00 : f32
    %36 = vector.broadcast %cst_36 : f32 to vector<10x32xf32>
    %37 = arith.addf %36, %35 : vector<10x32xf32>
    %38 = arith.divf %36, %37 : vector<10x32xf32>
    %39 = arith.addf %24, %29 : vector<10x32xf32>
    %40 = vector.broadcast %3 : vector<1x32xf32> to vector<10x32xf32>
    %41 = arith.addf %39, %40 : vector<10x32xf32>
    %42 = arith.negf %41 : vector<10x32xf32>
    %43 = math.exp %42 : vector<10x32xf32>
    %cst_37 = arith.constant 1.000000e+00 : f32
    %44 = vector.broadcast %cst_37 : f32 to vector<10x32xf32>
    %45 = arith.addf %44, %43 : vector<10x32xf32>
    %46 = arith.divf %44, %45 : vector<10x32xf32>
    %47 = vector.broadcast %4 : vector<1x32xf32> to vector<10x32xf32>
    %48 = arith.addf %27, %47 : vector<10x32xf32>
    %49 = vector.broadcast %5 : vector<1x32xf32> to vector<10x32xf32>
    %50 = arith.addf %30, %49 : vector<10x32xf32>
    %51 = arith.mulf %38, %50 : vector<10x32xf32>
    %52 = arith.addf %48, %51 : vector<10x32xf32>
    %53 = math.tanh %52 : vector<10x32xf32>
    %cst_38 = arith.constant 1.000000e+00 : f32
    %54 = vector.broadcast %cst_38 : f32 to vector<10x32xf32>
    %55 = arith.subf %54, %46 : vector<10x32xf32>
    %56 = arith.mulf %55, %53 : vector<10x32xf32>
    %57 = arith.mulf %46, %0 : vector<10x32xf32>
    %58 = arith.addf %56, %57 : vector<10x32xf32>
    %59 = arith.truncf %58 : vector<10x32xf32> to vector<10x32xbf16>
    %cst_39 = arith.constant dense<0.000000e+00> : vector<10x32xf32>
    %60 = tpu.matmul %1, %59, %cst_39 {dimension_numbers = #tpu.dot_dimension_numbers<[1], [0], [0], [1], [0, 0, 1, 1], [], []>} : vector<10x10xbf16>, vector<10x32xbf16>, vector<10x32xf32> -> vector<10x32xf32>
    %61 = arith.truncf %60 : vector<10x32xf32> to vector<10x32xbf16>
    %c3_40 = arith.constant 3 : index
    %c0_41 = arith.constant 0 : index
    %c0_42 = arith.constant 0 : index
    %62 = vector.load %arg5[%c3_40, %c0_41, %c0_42] : memref<6x32x32xbf16, #tpu.memory_space<vmem>>, vector<1x32x32xbf16>
    %63 = vector.shape_cast %62 : vector<1x32x32xbf16> to vector<32x32xbf16>
    %cst_43 = arith.constant dense<0.000000e+00> : vector<10x32xf32>
    %64 = tpu.matmul %61, %63, %cst_43 {dimension_numbers = #tpu.dot_dimension_numbers<[1], [0], [0], [1], [0, 0, 1, 1], [], []>} : vector<10x32xbf16>, vector<32x32xbf16>, vector<10x32xf32> -> vector<10x32xf32>
    %c4_44 = arith.constant 4 : index
    %c0_45 = arith.constant 0 : index
    %c0_46 = arith.constant 0 : index
    %65 = vector.load %arg5[%c4_44, %c0_45, %c0_46] : memref<6x32x32xbf16, #tpu.memory_space<vmem>>, vector<1x32x32xbf16>
    %66 = vector.shape_cast %65 : vector<1x32x32xbf16> to vector<32x32xbf16>
    %cst_47 = arith.constant dense<0.000000e+00> : vector<10x32xf32>
    %67 = tpu.matmul %61, %66, %cst_47 {dimension_numbers = #tpu.dot_dimension_numbers<[1], [0], [0], [1], [0, 0, 1, 1], [], []>} : vector<10x32xbf16>, vector<32x32xbf16>, vector<10x32xf32> -> vector<10x32xf32>
    %c5_48 = arith.constant 5 : index
    %c0_49 = arith.constant 0 : index
    %c0_50 = arith.constant 0 : index
    %68 = vector.load %arg5[%c5_48, %c0_49, %c0_50] : memref<6x32x32xbf16, #tpu.memory_space<vmem>>, vector<1x32x32xbf16>
    %69 = vector.shape_cast %68 : vector<1x32x32xbf16> to vector<32x32xbf16>
    %cst_51 = arith.constant dense<0.000000e+00> : vector<10x32xf32>
    %70 = tpu.matmul %61, %69, %cst_51 {dimension_numbers = #tpu.dot_dimension_numbers<[1], [0], [0], [1], [0, 0, 1, 1], [], []>} : vector<10x32xbf16>, vector<32x32xbf16>, vector<10x32xf32> -> vector<10x32xf32>
    %cst_52 = arith.constant dense<0.000000e+00> : vector<10x32xf32>
    %71 = tpu.matmul %59, %11, %cst_52 {dimension_numbers = #tpu.dot_dimension_numbers<[1], [0], [0], [1], [0, 0, 1, 1], [], []>} : vector<10x32xbf16>, vector<32x32xbf16>, vector<10x32xf32> -> vector<10x32xf32>
    %cst_53 = arith.constant dense<0.000000e+00> : vector<10x32xf32>
    %72 = tpu.matmul %59, %13, %cst_53 {dimension_numbers = #tpu.dot_dimension_numbers<[1], [0], [0], [1], [0, 0, 1, 1], [], []>} : vector<10x32xbf16>, vector<32x32xbf16>, vector<10x32xf32> -> vector<10x32xf32>
    %cst_54 = arith.constant dense<0.000000e+00> : vector<10x32xf32>
    %73 = tpu.matmul %59, %15, %cst_54 {dimension_numbers = #tpu.dot_dimension_numbers<[1], [0], [0], [1], [0, 0, 1, 1], [], []>} : vector<10x32xbf16>, vector<32x32xbf16>, vector<10x32xf32> -> vector<10x32xf32>
    %74 = arith.addf %64, %71 : vector<10x32xf32>
    %75 = vector.broadcast %2 : vector<1x32xf32> to vector<10x32xf32>
    %76 = arith.addf %74, %75 : vector<10x32xf32>
    %77 = arith.negf %76 : vector<10x32xf32>
    %78 = math.exp %77 : vector<10x32xf32>
    %cst_55 = arith.constant 1.000000e+00 : f32
    %79 = vector.broadcast %cst_55 : f32 to vector<10x32xf32>
    %80 = arith.addf %79, %78 : vector<10x32xf32>
    %81 = arith.divf %79, %80 : vector<10x32xf32>
    %82 = arith.addf %67, %72 : vector<10x32xf32>
    %83 = vector.broadcast %3 : vector<1x32xf32> to vector<10x32xf32>
    %84 = arith.addf %82, %83 : vector<10x32xf32>
    %85 = arith.negf %84 : vector<10x32xf32>
    %86 = math.exp %85 : vector<10x32xf32>
    %cst_56 = arith.constant 1.000000e+00 : f32
    %87 = vector.broadcast %cst_56 : f32 to vector<10x32xf32>
    %88 = arith.addf %87, %86 : vector<10x32xf32>
    %89 = arith.divf %87, %88 : vector<10x32xf32>
    %90 = vector.broadcast %4 : vector<1x32xf32> to vector<10x32xf32>
    %91 = arith.addf %70, %90 : vector<10x32xf32>
    %92 = vector.broadcast %5 : vector<1x32xf32> to vector<10x32xf32>
    %93 = arith.addf %73, %92 : vector<10x32xf32>
    %94 = arith.mulf %81, %93 : vector<10x32xf32>
    %95 = arith.addf %91, %94 : vector<10x32xf32>
    %96 = math.tanh %95 : vector<10x32xf32>
    %cst_57 = arith.constant 1.000000e+00 : f32
    %97 = vector.broadcast %cst_57 : f32 to vector<10x32xf32>
    %98 = arith.subf %97, %89 : vector<10x32xf32>
    %99 = arith.mulf %98, %96 : vector<10x32xf32>
    %100 = arith.mulf %89, %58 : vector<10x32xf32>
    %101 = arith.addf %99, %100 : vector<10x32xf32>
    %cst_58 = arith.constant 0.000000e+00 : f32
    %102 = vector.broadcast %cst_58 : f32 to vector<10x32xf32>
    %103 = arith.maximumf %101, %102 : vector<10x32xf32>
    %104 = arith.truncf %103 : vector<10x32xf32> to vector<10x32xbf16>
    %c0_59 = arith.constant 0 : index
    %c0_60 = arith.constant 0 : index
    %105 = vector.load %arg4[%c0_59, %c0_60] : memref<2x10xbf16, #tpu.memory_space<vmem>>, vector<2x10xbf16>
    %cst_61 = arith.constant dense<0.000000e+00> : vector<2x32xf32>
    %106 = tpu.matmul %105, %104, %cst_61 {dimension_numbers = #tpu.dot_dimension_numbers<[1], [0], [0], [1], [0, 0, 1, 1], [], []>} : vector<2x10xbf16>, vector<10x32xbf16>, vector<2x32xf32> -> vector<2x32xf32>
    %107 = arith.truncf %106 : vector<2x32xf32> to vector<2x32xbf16>
    %c0_62 = arith.constant 0 : index
    %c0_63 = arith.constant 0 : index
    %c0_64 = arith.constant 0 : index
    %108 = vector.load %arg7[%c0_62, %c0_63, %c0_64] : memref<4x32x32xbf16, #tpu.memory_space<vmem>>, vector<1x32x32xbf16>
    %109 = vector.shape_cast %108 : vector<1x32x32xbf16> to vector<32x32xbf16>
    %cst_65 = arith.constant dense<0.000000e+00> : vector<2x32xf32>
    %110 = tpu.matmul %107, %109, %cst_65 {dimension_numbers = #tpu.dot_dimension_numbers<[1], [0], [0], [1], [0, 0, 1, 1], [], []>} : vector<2x32xbf16>, vector<32x32xbf16>, vector<2x32xf32> -> vector<2x32xf32>
    %111 = arith.truncf %110 : vector<2x32xf32> to vector<2x32xbf16>
    %c0_66 = arith.constant 0 : index
    %c0_67 = arith.constant 0 : index
    %112 = vector.load %arg2[%c0_66, %c0_67] : memref<10x2xbf16, #tpu.memory_space<vmem>>, vector<10x2xbf16>
    %cst_68 = arith.constant dense<0.000000e+00> : vector<10x32xf32>
    %113 = tpu.matmul %112, %111, %cst_68 {dimension_numbers = #tpu.dot_dimension_numbers<[1], [0], [0], [1], [0, 0, 1, 1], [], []>} : vector<10x2xbf16>, vector<2x32xbf16>, vector<10x32xf32> -> vector<10x32xf32>
    %c1_69 = arith.constant 1 : index
    %c0_70 = arith.constant 0 : index
    %c0_71 = arith.constant 0 : index
    %114 = vector.load %arg7[%c1_69, %c0_70, %c0_71] : memref<4x32x32xbf16, #tpu.memory_space<vmem>>, vector<1x32x32xbf16>
    %115 = vector.shape_cast %114 : vector<1x32x32xbf16> to vector<32x32xbf16>
    %cst_72 = arith.constant dense<0.000000e+00> : vector<10x32xf32>
    %116 = tpu.matmul %104, %115, %cst_72 {dimension_numbers = #tpu.dot_dimension_numbers<[1], [0], [0], [1], [0, 0, 1, 1], [], []>} : vector<10x32xbf16>, vector<32x32xbf16>, vector<10x32xf32> -> vector<10x32xf32>
    %117 = arith.addf %113, %116 : vector<10x32xf32>
    %118 = vector.broadcast %6 : vector<1x32xf32> to vector<10x32xf32>
    %119 = arith.addf %117, %118 : vector<10x32xf32>
    %120 = arith.negf %119 : vector<10x32xf32>
    %121 = math.exp %120 : vector<10x32xf32>
    %cst_73 = arith.constant 1.000000e+00 : f32
    %122 = vector.broadcast %cst_73 : f32 to vector<10x32xf32>
    %123 = arith.addf %122, %121 : vector<10x32xf32>
    %124 = arith.divf %122, %123 : vector<10x32xf32>
    %125 = vector.broadcast %7 : vector<1x32xf32> to vector<10x32xf32>
    %126 = arith.mulf %124, %125 : vector<10x32xf32>
    %cst_74 = arith.constant dense<0.000000e+00> : vector<10xf32>
    %127 = vector.multi_reduction <add>, %126, %cst_74 [1] : vector<10x32xf32> to vector<10xf32>
    %128 = vector.shape_cast %127 : vector<10xf32> to vector<10x1xf32>
    %129 = vector.broadcast %9 : vector<1x1xf32> to vector<10x1xf32>
    %130 = arith.addf %128, %129 : vector<10x1xf32>
    %c0_75 = arith.constant 0 : index
    %c0_76 = arith.constant 0 : index
    %131 = vector.load %arg3[%c0_75, %c0_76] : memref<2x10xbf16, #tpu.memory_space<vmem>>, vector<2x10xbf16>
    %132 = vector.broadcast %130 : vector<10x1xf32> to vector<10x32xf32>
    %133 = arith.mulf %132, %103 : vector<10x32xf32>
    %134 = arith.truncf %133 : vector<10x32xf32> to vector<10x32xbf16>
    %cst_77 = arith.constant dense<0.000000e+00> : vector<2x32xf32>
    %135 = tpu.matmul %131, %134, %cst_77 {dimension_numbers = #tpu.dot_dimension_numbers<[1], [0], [0], [1], [0, 0, 1, 1], [], []>} : vector<2x10xbf16>, vector<10x32xbf16>, vector<2x32xf32> -> vector<2x32xf32>
    %c2_78 = arith.constant 2 : index
    %c0_79 = arith.constant 0 : index
    %c0_80 = arith.constant 0 : index
    %136 = vector.load %arg7[%c2_78, %c0_79, %c0_80] : memref<4x32x32xbf16, #tpu.memory_space<vmem>>, vector<1x32x32xbf16>
    %137 = vector.shape_cast %136 : vector<1x32x32xbf16> to vector<32x32xbf16>
    %cst_81 = arith.constant dense<0.000000e+00> : vector<2x32xf32>
    %138 = tpu.matmul %107, %137, %cst_81 {dimension_numbers = #tpu.dot_dimension_numbers<[1], [0], [0], [1], [0, 0, 1, 1], [], []>} : vector<2x32xbf16>, vector<32x32xbf16>, vector<2x32xf32> -> vector<2x32xf32>
    %139 = arith.truncf %135 : vector<2x32xf32> to vector<2x32xbf16>
    %c3_82 = arith.constant 3 : index
    %c0_83 = arith.constant 0 : index
    %c0_84 = arith.constant 0 : index
    %140 = vector.load %arg7[%c3_82, %c0_83, %c0_84] : memref<4x32x32xbf16, #tpu.memory_space<vmem>>, vector<1x32x32xbf16>
    %141 = vector.shape_cast %140 : vector<1x32x32xbf16> to vector<32x32xbf16>
    %cst_85 = arith.constant dense<0.000000e+00> : vector<2x32xf32>
    %142 = tpu.matmul %139, %141, %cst_85 {dimension_numbers = #tpu.dot_dimension_numbers<[1], [0], [0], [1], [0, 0, 1, 1], [], []>} : vector<2x32xbf16>, vector<32x32xbf16>, vector<2x32xf32> -> vector<2x32xf32>
    %143 = arith.addf %138, %142 : vector<2x32xf32>
    %144 = vector.broadcast %8 : vector<1x32xf32> to vector<2x32xf32>
    %145 = arith.addf %143, %144 : vector<2x32xf32>
    %c0_86 = arith.constant 0 : index
    %c0_87 = arith.constant 0 : index
    %146 = vector.load %arg9[%c0_86, %c0_87] : memref<2x32xf32, #tpu.memory_space<vmem>>, vector<2x32xf32>
    tpu.vector_store %arg9[%c0_86, %c0_87], %145 {strides = array<i32>} : memref<2x32xf32, #tpu.memory_space<vmem>>, vector<2x32xf32>,
    return
  }
}

</mosaic_0001>

<llo_original>
// kernel: tpu_custom_call.1
$region0: #{tpu_custom_call.1}
  #allocation0 [shape = 'u32[]', space=smem, size = 0x4, offset = 0x4, fixed_abs, tag = 'smem constant byte address 0x4 - core index']
  #allocation1 [shape = 'u32[144,128]{1,0:T(1,128)}', space=vmem, size = 0x12000, scoped, tag = 'internal scratch']
  %s0 = inlined_call_operand.hbm [shape: f32[10,32], index: 0, kind: input, shape index: {}]
  %s1 = inlined_call_operand.vmem [shape: bf16[10,10], index: 1, kind: input, shape index: {}]
  %s2 = inlined_call_operand.vmem [shape: bf16[10,2], index: 2, kind: input, shape index: {}]
  %s3 = inlined_call_operand.vmem [shape: bf16[2,10], index: 3, kind: input, shape index: {}]
  %s4 = inlined_call_operand.vmem [shape: bf16[2,10], index: 4, kind: input, shape index: {}]
  %s5 = inlined_call_operand.hbm [shape: bf16[6,32,32], index: 5, kind: input, shape index: {}]
  %s6 = inlined_call_operand.hbm [shape: bf16[3,32,32], index: 6, kind: input, shape index: {}]
  %s7 = inlined_call_operand.hbm [shape: bf16[4,32,32], index: 7, kind: input, shape index: {}]
  %s8 = inlined_call_operand.vmem [shape: f32[8,32], index: 8, kind: input, shape index: {}]
  %s9 = inlined_call_operand.hbm [shape: f32[2,32], index: 9, kind: output, shape index: {}]
  %s10 = sld [smem:[#allocation0]]
  $region62: #{tpu_custom_call.1} parent=0
    _
  %s12 = ssub.s32 1, %s10
  %s13 = scalar_select 0, %s12, %s10
  $region1: #{tpu_custom_call.1} parent=0
    #allocation2 [shape = 'u8[8192]{0}', space=vmem, size = 0x2000, scoped, tag = 'input window, operand 0, single buffered']
    #allocation3 [shape = 's32[1]{0}', space=sflag, size = 0x4, scoped, tag = 'scoped memory for tpu_custom_call.1']
    #allocation4 [shape = 's32[1]{0}', space=sflag, size = 0x4, scoped, tag = 'scoped memory for tpu_custom_call.1']
    #allocation5 [shape = 'u8[49152]{0}', space=vmem, size = 0xc000, scoped, tag = 'input window, operand 5, single buffered']
    #allocation6 [shape = 's32[1]{0}', space=sflag, size = 0x4, scoped, tag = 'scoped memory for tpu_custom_call.1']
    #allocation7 [shape = 'u8[24576]{0}', space=vmem, size = 0x6000, scoped, tag = 'input window, operand 6, single buffered']
    #allocation8 [shape = 'u8[32768]{0}', space=vmem, size = 0x8000, scoped, tag = 'input window, operand 7, single buffered']
    #allocation9 [shape = 's32[1]{0}', space=sflag, size = 0x4, scoped, tag = 'scoped memory for tpu_custom_call.1']
    #allocation10 [shape = 'u8[1024]{0}', space=vmem, size = 0x400, scoped, tag = 'output window, operand 0, single buffered']
    %14 = vsyncpa [#allocation3], 0
    %15 = vsyncpa [#allocation6], 0
    %16 = vsyncpa [#allocation9], 0
    %17 = vsyncpa [#allocation4], 0
    // Predicated region
    $region2: #{tpu_custom_call.1} parent=1 // pred_check
      _
    $region3: #{tpu_custom_call.1} parent=1 // pred_check_branch
      %19 = sbr.rel (0) target = $region5
    $region4: #{tpu_custom_call.1} parent=1 // pred_region
      %s21 = ssub.s32 256, 256
      %22 = vsyncadd [#allocation3], %s21
      %s23 = sshll.u32 [#allocation2], 4
      %s24 = int_to_ptr.vmem [resolvable:$true] %s23
      %29 = dma.hbm_to_vmem [thread:$0]  %s0, 256, %s24, [#allocation3], 128, 128, 8
    $region5: #{tpu_custom_call.1} parent=1 // pred_fallthru
      _
    // Predicated region
    $region6: #{tpu_custom_call.1} parent=1 // pred_check
      _
    $region7: #{tpu_custom_call.1} parent=1 // pred_check_branch
      %31 = sbr.rel (0) target = $region9
    $region8: #{tpu_custom_call.1} parent=1 // pred_region
      _
    $region9: #{tpu_custom_call.1} parent=1 // pred_fallthru
      _
    // Predicated region
    $region10: #{tpu_custom_call.1} parent=1 // pred_check
      _
    $region11: #{tpu_custom_call.1} parent=1 // pred_check_branch
      %33 = sbr.rel (0) target = $region13
    $region12: #{tpu_custom_call.1} parent=1 // pred_region
      _
    $region13: #{tpu_custom_call.1} parent=1 // pred_fallthru
      _
    // Predicated region
    $region14: #{tpu_custom_call.1} parent=1 // pred_check
      _
    $region15: #{tpu_custom_call.1} parent=1 // pred_check_branch
      %35 = sbr.rel (0) target = $region17
    $region16: #{tpu_custom_call.1} parent=1 // pred_region
      _
    $region17: #{tpu_custom_call.1} parent=1 // pred_fallthru
      _
    // Predicated region
    $region18: #{tpu_custom_call.1} parent=1 // pred_check
      _
    $region19: #{tpu_custom_call.1} parent=1 // pred_check_branch
      %37 = sbr.rel (0) target = $region21
    $region20: #{tpu_custom_call.1} parent=1 // pred_region
      _
    $region21: #{tpu_custom_call.1} parent=1 // pred_fallthru
      _
    // Predicated region
    $region22: #{tpu_custom_call.1} parent=1 // pred_check
      _
    $region23: #{tpu_custom_call.1} parent=1 // pred_check_branch
      %39 = sbr.rel (0) target = $region25
    $region24: #{tpu_custom_call.1} parent=1 // pred_region
      %s41 = ssub.s32 1536, 1536
      %42 = vsyncadd [#allocation6], %s41
      %s43 = sshll.u32 [#allocation5], 4
      %s44 = int_to_ptr.vmem [resolvable:$true] %s43
      %49 = dma.hbm_to_vmem [thread:$0]  %s5, 1536, %s44, [#allocation6], 64, 64, 4
    $region25: #{tpu_custom_call.1} parent=1 // pred_fallthru
      _
    // Predicated region
    $region26: #{tpu_custom_call.1} parent=1 // pred_check
      _
    $region27: #{tpu_custom_call.1} parent=1 // pred_check_branch
      %51 = sbr.rel (0) target = $region29
    $region28: #{tpu_custom_call.1} parent=1 // pred_region
      %s53 = ssub.s32 768, 768
      %54 = vsyncadd [#allocation6], %s53
      %s55 = sshll.u32 [#allocation7], 4
      %s56 = int_to_ptr.vmem [resolvable:$true] %s55
      %61 = dma.hbm_to_vmem [thread:$0]  %s6, 768, %s56, [#allocation6], 64, 64, 4
    $region29: #{tpu_custom_call.1} parent=1 // pred_fallthru
      _
    // Predicated region
    $region30: #{tpu_custom_call.1} parent=1 // pred_check
      _
    $region31: #{tpu_custom_call.1} parent=1 // pred_check_branch
      %63 = sbr.rel (0) target = $region33
    $region32: #{tpu_custom_call.1} parent=1 // pred_region
      %s65 = ssub.s32 1024, 1024
      %66 = vsyncadd [#allocation9], %s65
      %s67 = sshll.u32 [#allocation8], 4
      %s68 = int_to_ptr.vmem [resolvable:$true] %s67
      %73 = dma.hbm_to_vmem [thread:$0]  %s7, 1024, %s68, [#allocation9], 64, 64, 4
    $region33: #{tpu_custom_call.1} parent=1 // pred_fallthru
      _
    // Predicated region
    $region34: #{tpu_custom_call.1} parent=1 // pred_check
      _
    $region35: #{tpu_custom_call.1} parent=1 // pred_check_branch
      %75 = sbr.rel (0) target = $region37
    $region36: #{tpu_custom_call.1} parent=1 // pred_region
      _
    $region37: #{tpu_custom_call.1} parent=1 // pred_fallthru
      _
    // Predicated region
    $region38: #{tpu_custom_call.1} parent=1 // pred_check
      _
    $region39: #{tpu_custom_call.1} parent=1 // pred_check_branch
      %77 = sbr.rel (0) target = $region41
    $region40: #{tpu_custom_call.1} parent=1 // pred_region
      %78 = dma.done [#allocation3], 256
    $region41: #{tpu_custom_call.1} parent=1 // pred_fallthru
      _
    // Predicated region
    $region42: #{tpu_custom_call.1} parent=1 // pred_check
      _
    $region43: #{tpu_custom_call.1} parent=1 // pred_check_branch
      %80 = sbr.rel (0) target = $region45
    $region44: #{tpu_custom_call.1} parent=1 // pred_region
      %81 = dma.done [#allocation6], 1536
    $region45: #{tpu_custom_call.1} parent=1 // pred_fallthru
      _
    // Predicated region
    $region46: #{tpu_custom_call.1} parent=1 // pred_check
      _
    $region47: #{tpu_custom_call.1} parent=1 // pred_check_branch
      %83 = sbr.rel (0) target = $region49
    $region48: #{tpu_custom_call.1} parent=1 // pred_region
      %84 = dma.done [#allocation6], 768
    $region49: #{tpu_custom_call.1} parent=1 // pred_fallthru
      _
    // Predicated region
    $region50: #{tpu_custom_call.1} parent=1 // pred_check
      _
    $region51: #{tpu_custom_call.1} parent=1 // pred_check_branch
      %86 = sbr.rel (0) target = $region53
    $region52: #{tpu_custom_call.1} parent=1 // pred_region
      %87 = dma.done [#allocation9], 1024
    $region53: #{tpu_custom_call.1} parent=1 // pred_fallthru
      _
    %v89 = vld [vmem:[#allocation2] sm:$0xff]
    %v90 = vld [vmem:[#allocation2 + $0x8] sm:$0x3]
    %v91 = vld [vmem:[%s1] sm:$0xf]
    %v92 = vld [vmem:[%s1 + $0x4] sm:$0x1]
    %v93 = vld [vmem:[%s8] sm:$0x1]
    %v94 = vld [vmem:[%s8 + $0x1] sm:$0x1]
    %v95 = vld [vmem:[%s8 + $0x2] sm:$0x1]
    %v96 = vld [vmem:[%s8 + $0x3] sm:$0x1]
    %v97 = vld [vmem:[%s8 + $0x4] sm:$0x1]
    %v98 = vld [vmem:[%s8 + $0x5] sm:$0x1]
    %v99 = vld [vmem:[%s8 + $0x6] sm:$0x1]
    %v100 = vld [vmem:[%s8 + $0x7] sm:$0x1]
    %v101 = vld [vmem:[#allocation7] sm:$0xf]
    %v102 = vld [vmem:[#allocation7 + $0x4] sm:$0xf]
    %v103 = vld [vmem:[#allocation7 + $0x8] sm:$0xf]
    %v104 = vld [vmem:[#allocation7 + $0xc] sm:$0xf]
    %s105 = scalar_lea.vmem [#allocation7], 16
    %v106 = vld [vmem:[%s105] sm:$0xf]
    %v107 = vld [vmem:[%s105 + $0x4] sm:$0xf]
    %v108 = vld [vmem:[%s105 + $0x8] sm:$0xf]
    %v109 = vld [vmem:[%s105 + $0xc] sm:$0xf]
    %s110 = scalar_lea.vmem [#allocation7], 32
    %v111 = vld [vmem:[%s110] sm:$0xf]
    %v112 = vld [vmem:[%s110 + $0x4] sm:$0xf]
    %v113 = vld [vmem:[%s110 + $0x8] sm:$0xf]
    %v114 = vld [vmem:[%s110 + $0xc] sm:$0xf]
    %v115 = vpack.c.bf16 %v90, %v89
    %v118 = vunpack.c.l.b16 %v91
    %v119 = vunpack.c.l.b16 %v92
    %v120 = vpack.c.b16 %v119, %v118
    %vm121 = vcmask 80896
    %v123 = vsel %vm121, %v120, 0
    %vm125 = vcmask 1044480
    %v127 = vsel %vm125, %v115, 0
    %129 = vmatprep.subr.bf16.mxu0 0
    %130 = vmatpush1.bf16.msra.mxu0 %v127
    %131 = vmatprep.subr.bf16.mxu0 0
    %132 = vmatpush1.bf16.msra.mxu0 0
    %133 = vmatprep.subr.bf16.mxu0 0
    %134 = vmatpush1.bf16.msra.mxu0 0
    %135 = vmatprep.subr.bf16.mxu0 0
    %136 = vmatpush1.bf16.msra.mxu0 0
    %137 = vmatprep.subr.bf16.mxu0 0
    %138 = vmatpush1.bf16.msra.mxu0 0
    %139 = vmatprep.subr.bf16.mxu0 0
    %140 = vmatpush1.bf16.msra.mxu0 0
    %141 = vmatprep.subr.bf16.mxu0 0
    %142 = vmatpush1.bf16.msra.mxu0 0
    %143 = vmatprep.subr.bf16.mxu0 0
    %144 = vmatpush1.bf16.msra.mxu0 0
    %145 = vmatprep.subr.bf16.mxu0 0
    %146 = vmatpush1.bf16.msra.mxu0 0
    %147 = vmatprep.subr.bf16.mxu0 0
    %148 = vmatpush1.bf16.msra.mxu0 0
    %149 = vmatprep.subr.bf16.mxu0 0
    %150 = vmatpush1.bf16.msra.mxu0 0
    %151 = vmatprep.subr.bf16.mxu0 0
    %152 = vmatpush1.bf16.msra.mxu0 0
    %153 = vmatprep.subr.bf16.mxu0 0
    %154 = vmatpush1.bf16.msra.mxu0 0
    %155 = vmatprep.subr.bf16.mxu0 0
    %156 = vmatpush1.bf16.msra.mxu0 0
    %157 = vmatprep.subr.bf16.mxu0 0
    %158 = vmatpush1.bf16.msra.mxu0 0
    %159 = vmatprep.subr.bf16.mxu0 0
    %160 = vmatpush1.bf16.msra.mxu0 0
    %161 = vmatprep.mubr.bf16.mxu0 0
    %162 = vmatmul.mubr.bf16.gmra.mrb[0].mxu0 %v123
    %v163 = vpop.f32.mrb[0].mxu0
    %v164 = vadd.f32 0.0, %v163
    %v165 = vpop.f32.mrb[0].mxu0
    %v166 = vpop.f32.mrb[0].mxu0
    %v167 = vadd.f32 0.0, %v166
    %v168 = vpop.f32.mrb[0].mxu0
    %169 = vdwg.mxu0
    %v170 = vpack.c.bf16 %v167, %v164
    %v171 = vld [vmem:[#allocation5] sm:$0xf]
    %v172 = vld [vmem:[#allocation5 + $0x4] sm:$0xf]
    %v173 = vld [vmem:[#allocation5 + $0x8] sm:$0xf]
    %v174 = vld [vmem:[#allocation5 + $0xc] sm:$0xf]
    %s175 = scalar_lea.vmem [#allocation5], 16
    %v176 = vld [vmem:[%s175] sm:$0xf]
    %v177 = vld [vmem:[%s175 + $0x4] sm:$0xf]
    %v178 = vld [vmem:[%s175 + $0x8] sm:$0xf]
    %v179 = vld [vmem:[%s175 + $0xc] sm:$0xf]
    %s180 = scalar_lea.vmem [#allocation5], 32
    %v181 = vld [vmem:[%s180] sm:$0xf]
    %v182 = vld [vmem:[%s180 + $0x4] sm:$0xf]
    %v183 = vld [vmem:[%s180 + $0x8] sm:$0xf]
    %v184 = vld [vmem:[%s180 + $0xc] sm:$0xf]
    %v189 = vunpack.c.l.b16 %v101
    %v190 = vunpack.c.l.b16 %v102
    %v191 = vunpack.c.l.b16 %v103
    %v192 = vunpack.c.l.b16 %v104
    %v193 = vpack.c.b16 %v190, %v189
    %v194 = vpack.c.b16 %v192, %v191
    %vm197 = vcmask 261120
    %v198 = vsel %vm197, %v115, 0
    %200 = vmatprep.subr.bf16.mxu0 0
    %201 = vmatpush1.bf16.msra.mxu0 %v193
    %202 = vmatprep.subr.bf16.mxu0 0
    %203 = vmatpush1.bf16.msra.mxu0 %v194
    %204 = vmatprep.subr.bf16.mxu0 0
    %205 = vmatpush1.bf16.msra.mxu0 0
    %206 = vmatprep.subr.bf16.mxu0 0
    %207 = vmatpush1.bf16.msra.mxu0 0
    %208 = vmatprep.subr.bf16.mxu0 0
    %209 = vmatpush1.bf16.msra.mxu0 0
    %210 = vmatprep.subr.bf16.mxu0 0
    %211 = vmatpush1.bf16.msra.mxu0 0
    %212 = vmatprep.subr.bf16.mxu0 0
    %213 = vmatpush1.bf16.msra.mxu0 0
    %214 = vmatprep.subr.bf16.mxu0 0
    %215 = vmatpush1.bf16.msra.mxu0 0
    %216 = vmatprep.subr.bf16.mxu0 0
    %217 = vmatpush1.bf16.msra.mxu0 0
    %218 = vmatprep.subr.bf16.mxu0 0
    %219 = vmatpush1.bf16.msra.mxu0 0
    %220 = vmatprep.subr.bf16.mxu0 0
    %221 = vmatpush1.bf16.msra.mxu0 0
    %222 = vmatprep.subr.bf16.mxu0 0
    %223 = vmatpush1.bf16.msra.mxu0 0
    %224 = vmatprep.subr.bf16.mxu0 0
    %225 = vmatpush1.bf16.msra.mxu0 0
    %226 = vmatprep.subr.bf16.mxu0 0
    %227 = vmatpush1.bf16.msra.mxu0 0
    %228 = vmatprep.subr.bf16.mxu0 0
    %229 = vmatpush1.bf16.msra.mxu0 0
    %230 = vmatprep.subr.bf16.mxu0 0
    %231 = vmatpush1.bf16.msra.mxu0 0
    %232 = vmatprep.mubr.bf16.mxu0 0
    %233 = vmatmul.mubr.bf16.gmra.mrb[0].mxu0 %v198
    %v234 = vpop.f32.mrb[0].mxu0
    %v235 = vadd.f32 0.0, %v234
    %v236 = vpop.f32.mrb[0].mxu0
    %v237 = vpop.f32.mrb[0].mxu0
    %v238 = vadd.f32 0.0, %v237
    %v239 = vpop.f32.mrb[0].mxu0
    %240 = vdwg.mxu0
    %v245 = vunpack.c.l.b16 %v106
    %v246 = vunpack.c.l.b16 %v107
    %v247 = vunpack.c.l.b16 %v108
    %v248 = vunpack.c.l.b16 %v109
    %v249 = vpack.c.b16 %v246, %v245
    %v250 = vpack.c.b16 %v248, %v247
    %253 = vmatprep.subr.bf16.mxu0 0
    %254 = vmatpush1.bf16.msra.mxu0 %v249
    %255 = vmatprep.subr.bf16.mxu0 0
    %256 = vmatpush1.bf16.msra.mxu0 %v250
    %257 = vmatprep.subr.bf16.mxu0 0
    %258 = vmatpush1.bf16.msra.mxu0 0
    %259 = vmatprep.subr.bf16.mxu0 0
    %260 = vmatpush1.bf16.msra.mxu0 0
    %261 = vmatprep.subr.bf16.mxu0 0
    %262 = vmatpush1.bf16.msra.mxu0 0
    %263 = vmatprep.subr.bf16.mxu0 0
    %264 = vmatpush1.bf16.msra.mxu0 0
    %265 = vmatprep.subr.bf16.mxu0 0
    %266 = vmatpush1.bf16.msra.mxu0 0
    %267 = vmatprep.subr.bf16.mxu0 0
    %268 = vmatpush1.bf16.msra.mxu0 0
    %269 = vmatprep.subr.bf16.mxu0 0
    %270 = vmatpush1.bf16.msra.mxu0 0
    %271 = vmatprep.subr.bf16.mxu0 0
    %272 = vmatpush1.bf16.msra.mxu0 0
    %273 = vmatprep.subr.bf16.mxu0 0
    %274 = vmatpush1.bf16.msra.mxu0 0
    %275 = vmatprep.subr.bf16.mxu0 0
    %276 = vmatpush1.bf16.msra.mxu0 0
    %277 = vmatprep.subr.bf16.mxu0 0
    %278 = vmatpush1.bf16.msra.mxu0 0
    %279 = vmatprep.subr.bf16.mxu0 0
    %280 = vmatpush1.bf16.msra.mxu0 0
    %281 = vmatprep.subr.bf16.mxu0 0
    %282 = vmatpush1.bf16.msra.mxu0 0
    %283 = vmatprep.subr.bf16.mxu0 0
    %284 = vmatpush1.bf16.msra.mxu0 0
    %285 = vmatprep.mubr.bf16.mxu0 0
    %286 = vmatmul.mubr.bf16.gmra.mrb[0].mxu0 %v198
    %v287 = vpop.f32.mrb[0].mxu0
    %v288 = vadd.f32 0.0, %v287
    %v289 = vpop.f32.mrb[0].mxu0
    %v290 = vpop.f32.mrb[0].mxu0
    %v291 = vadd.f32 0.0, %v290
    %v292 = vpop.f32.mrb[0].mxu0
    %293 = vdwg.mxu0
    %v298 = vunpack.c.l.b16 %v171
    %v299 = vunpack.c.l.b16 %v172
    %v300 = vunpack.c.l.b16 %v173
    %v301 = vunpack.c.l.b16 %v174
    %v302 = vpack.c.b16 %v299, %v298
    %v303 = vpack.c.b16 %v301, %v300
    %v307 = vsel %vm197, %v170, 0
    %309 = vmatprep.subr.bf16.mxu0 0
    %310 = vmatpush1.bf16.msra.mxu0 %v302
    %311 = vmatprep.subr.bf16.mxu0 0
    %312 = vmatpush1.bf16.msra.mxu0 %v303
    %313 = vmatprep.subr.bf16.mxu0 0
    %314 = vmatpush1.bf16.msra.mxu0 0
    %315 = vmatprep.subr.bf16.mxu0 0
    %316 = vmatpush1.bf16.msra.mxu0 0
    %317 = vmatprep.subr.bf16.mxu0 0
    %318 = vmatpush1.bf16.msra.mxu0 0
    %319 = vmatprep.subr.bf16.mxu0 0
    %320 = vmatpush1.bf16.msra.mxu0 0
    %321 = vmatprep.subr.bf16.mxu0 0
    %322 = vmatpush1.bf16.msra.mxu0 0
    %323 = vmatprep.subr.bf16.mxu0 0
    %324 = vmatpush1.bf16.msra.mxu0 0
    %325 = vmatprep.subr.bf16.mxu0 0
    %326 = vmatpush1.bf16.msra.mxu0 0
    %327 = vmatprep.subr.bf16.mxu0 0
    %328 = vmatpush1.bf16.msra.mxu0 0
    %329 = vmatprep.subr.bf16.mxu0 0
    %330 = vmatpush1.bf16.msra.mxu0 0
    %331 = vmatprep.subr.bf16.mxu0 0
    %332 = vmatpush1.bf16.msra.mxu0 0
    %333 = vmatprep.subr.bf16.mxu0 0
    %334 = vmatpush1.bf16.msra.mxu0 0
    %335 = vmatprep.subr.bf16.mxu0 0
    %336 = vmatpush1.bf16.msra.mxu0 0
    %337 = vmatprep.subr.bf16.mxu0 0
    %338 = vmatpush1.bf16.msra.mxu0 0
    %339 = vmatprep.subr.bf16.mxu0 0
    %340 = vmatpush1.bf16.msra.mxu0 0
    %341 = vmatprep.mubr.bf16.mxu0 0
    %342 = vmatmul.mubr.bf16.gmra.mrb[0].mxu0 %v307
    %v343 = vpop.f32.mrb[0].mxu0
    %v344 = vadd.f32 %v235, %v343
    %v345 = vpop.f32.mrb[0].mxu0
    %v346 = vpop.f32.mrb[0].mxu0
    %v347 = vadd.f32 %v238, %v346
    %v348 = vpop.f32.mrb[0].mxu0
    %349 = vdwg.mxu0
    %v350 = vlaneseq
    %v351 = vshrl.u32 %v350, 7
    %v352 = vsub.s32 0, %v351
    %v353 = vrot.slane %v93, %v352
    %v354 = vadd.f32 %v344, %v353
    %v355 = vadd.f32 %v347, %v353
    %v356 = vxor.u32 %v354, 2147483648
    %v357 = vxor.u32 %v355, 2147483648
    %v358 = vmul.f32 %v356, 1.442695
    %v359 = vpow.pop %v358
    %v360 = vmul.f32 %v357, 1.442695
    %v361 = vpow.pop %v360
    %v362 = vadd.f32 %v359, 1.0
    %v363 = vadd.f32 %v361, 1.0
    %v364 = vrcp.pop %v362
    %v365 = vmul.f32 1.0, %v364
    %v366 = vrcp.pop %v363
    %v367 = vmul.f32 1.0, %v366
    %v372 = vunpack.c.l.b16 %v176
    %v373 = vunpack.c.l.b16 %v177
    %v374 = vunpack.c.l.b16 %v178
    %v375 = vunpack.c.l.b16 %v179
    %v376 = vpack.c.b16 %v373, %v372
    %v377 = vpack.c.b16 %v375, %v374
    %380 = vmatprep.subr.bf16.mxu0 0
    %381 = vmatpush1.bf16.msra.mxu0 %v376
    %382 = vmatprep.subr.bf16.mxu0 0
    %383 = vmatpush1.bf16.msra.mxu0 %v377
    %384 = vmatprep.subr.bf16.mxu0 0
    %385 = vmatpush1.bf16.msra.mxu0 0
    %386 = vmatprep.subr.bf16.mxu0 0
    %387 = vmatpush1.bf16.msra.mxu0 0
    %388 = vmatprep.subr.bf16.mxu0 0
    %389 = vmatpush1.bf16.msra.mxu0 0
    %390 = vmatprep.subr.bf16.mxu0 0
    %391 = vmatpush1.bf16.msra.mxu0 0
    %392 = vmatprep.subr.bf16.mxu0 0
    %393 = vmatpush1.bf16.msra.mxu0 0
    %394 = vmatprep.subr.bf16.mxu0 0
    %395 = vmatpush1.bf16.msra.mxu0 0
    %396 = vmatprep.subr.bf16.mxu0 0
    %397 = vmatpush1.bf16.msra.mxu0 0
    %398 = vmatprep.subr.bf16.mxu0 0
    %399 = vmatpush1.bf16.msra.mxu0 0
    %400 = vmatprep.subr.bf16.mxu0 0
    %401 = vmatpush1.bf16.msra.mxu0 0
    %402 = vmatprep.subr.bf16.mxu0 0
    %403 = vmatpush1.bf16.msra.mxu0 0
    %404 = vmatprep.subr.bf16.mxu0 0
    %405 = vmatpush1.bf16.msra.mxu0 0
    %406 = vmatprep.subr.bf16.mxu0 0
    %407 = vmatpush1.bf16.msra.mxu0 0
    %408 = vmatprep.subr.bf16.mxu0 0
    %409 = vmatpush1.bf16.msra.mxu0 0
    %410 = vmatprep.subr.bf16.mxu0 0
    %411 = vmatpush1.bf16.msra.mxu0 0
    %412 = vmatprep.mubr.bf16.mxu0 0
    %413 = vmatmul.mubr.bf16.gmra.mrb[0].mxu0 %v307
    %v414 = vpop.f32.mrb[0].mxu0
    %v415 = vadd.f32 %v288, %v414
    %v416 = vpop.f32.mrb[0].mxu0
    %v417 = vpop.f32.mrb[0].mxu0
    %v418 = vadd.f32 %v291, %v417
    %v419 = vpop.f32.mrb[0].mxu0
    %420 = vdwg.mxu0
    %v421 = vlaneseq
    %v422 = vshrl.u32 %v421, 7
    %v423 = vsub.s32 0, %v422
    %v424 = vrot.slane %v94, %v423
    %v425 = vadd.f32 %v415, %v424
    %v426 = vadd.f32 %v418, %v424
    %v427 = vxor.u32 %v425, 2147483648
    %v428 = vxor.u32 %v426, 2147483648
    %v429 = vmul.f32 %v427, 1.442695
    %v430 = vpow.pop %v429
    %v431 = vmul.f32 %v428, 1.442695
    %v432 = vpow.pop %v431
    %v433 = vadd.f32 %v430, 1.0
    %v434 = vadd.f32 %v432, 1.0
    %v435 = vrcp.pop %v433
    %v436 = vmul.f32 1.0, %v435
    %v437 = vrcp.pop %v434
    %v438 = vmul.f32 1.0, %v437
    %v439 = vlaneseq
    %v440 = vshrl.u32 %v439, 7
    %v441 = vsub.s32 0, %v440
    %v442 = vrot.slane %v95, %v441
    %v447 = vunpack.c.l.b16 %v181
    %v448 = vunpack.c.l.b16 %v182
    %v449 = vunpack.c.l.b16 %v183
    %v450 = vunpack.c.l.b16 %v184
    %v451 = vpack.c.b16 %v448, %v447
    %v452 = vpack.c.b16 %v450, %v449
    %455 = vmatprep.subr.bf16.mxu0 0
    %456 = vmatpush1.bf16.msra.mxu0 %v451
    %457 = vmatprep.subr.bf16.mxu0 0
    %458 = vmatpush1.bf16.msra.mxu0 %v452
    %459 = vmatprep.subr.bf16.mxu0 0
    %460 = vmatpush1.bf16.msra.mxu0 0
    %461 = vmatprep.subr.bf16.mxu0 0
    %462 = vmatpush1.bf16.msra.mxu0 0
    %463 = vmatprep.subr.bf16.mxu0 0
    %464 = vmatpush1.bf16.msra.mxu0 0
    %465 = vmatprep.subr.bf16.mxu0 0
    %466 = vmatpush1.bf16.msra.mxu0 0
    %467 = vmatprep.subr.bf16.mxu0 0
    %468 = vmatpush1.bf16.msra.mxu0 0
    %469 = vmatprep.subr.bf16.mxu0 0
    %470 = vmatpush1.bf16.msra.mxu0 0
    %471 = vmatprep.subr.bf16.mxu0 0
    %472 = vmatpush1.bf16.msra.mxu0 0
    %473 = vmatprep.subr.bf16.mxu0 0
    %474 = vmatpush1.bf16.msra.mxu0 0
    %475 = vmatprep.subr.bf16.mxu0 0
    %476 = vmatpush1.bf16.msra.mxu0 0
    %477 = vmatprep.subr.bf16.mxu0 0
    %478 = vmatpush1.bf16.msra.mxu0 0
    %479 = vmatprep.subr.bf16.mxu0 0
    %480 = vmatpush1.bf16.msra.mxu0 0
    %481 = vmatprep.subr.bf16.mxu0 0
    %482 = vmatpush1.bf16.msra.mxu0 0
    %483 = vmatprep.subr.bf16.mxu0 0
    %484 = vmatpush1.bf16.msra.mxu0 0
    %485 = vmatprep.subr.bf16.mxu0 0
    %486 = vmatpush1.bf16.msra.mxu0 0
    %487 = vmatprep.mubr.bf16.mxu0 0
    %488 = vmatmul.mubr.bf16.gmra.mrb[0].mxu0 %v307
    %v489 = vpop.f32.mrb[0].mxu0
    %v490 = vadd.f32 %v442, %v489
    %v491 = vpop.f32.mrb[0].mxu0
    %v492 = vpop.f32.mrb[0].mxu0
    %v493 = vadd.f32 %v442, %v492
    %v494 = vpop.f32.mrb[0].mxu0
    %495 = vdwg.mxu0
    %v496 = vlaneseq
    %v497 = vshrl.u32 %v496, 7
    %v498 = vsub.s32 0, %v497
    %v499 = vrot.slane %v96, %v498
    %v504 = vunpack.c.l.b16 %v111
    %v505 = vunpack.c.l.b16 %v112
    %v506 = vunpack.c.l.b16 %v113
    %v507 = vunpack.c.l.b16 %v114
    %v508 = vpack.c.b16 %v505, %v504
    %v509 = vpack.c.b16 %v507, %v506
    %512 = vmatprep.subr.bf16.mxu0 0
    %513 = vmatpush1.bf16.msra.mxu0 %v508
    %514 = vmatprep.subr.bf16.mxu0 0
    %515 = vmatpush1.bf16.msra.mxu0 %v509
    %516 = vmatprep.subr.bf16.mxu0 0
    %517 = vmatpush1.bf16.msra.mxu0 0
    %518 = vmatprep.subr.bf16.mxu0 0
    %519 = vmatpush1.bf16.msra.mxu0 0
    %520 = vmatprep.subr.bf16.mxu0 0
    %521 = vmatpush1.bf16.msra.mxu0 0
    %522 = vmatprep.subr.bf16.mxu0 0
    %523 = vmatpush1.bf16.msra.mxu0 0
    %524 = vmatprep.subr.bf16.mxu0 0
    %525 = vmatpush1.bf16.msra.mxu0 0
    %526 = vmatprep.subr.bf16.mxu0 0
    %527 = vmatpush1.bf16.msra.mxu0 0
    %528 = vmatprep.subr.bf16.mxu0 0
    %529 = vmatpush1.bf16.msra.mxu0 0
    %530 = vmatprep.subr.bf16.mxu0 0
    %531 = vmatpush1.bf16.msra.mxu0 0
    %532 = vmatprep.subr.bf16.mxu0 0
    %533 = vmatpush1.bf16.msra.mxu0 0
    %534 = vmatprep.subr.bf16.mxu0 0
    %535 = vmatpush1.bf16.msra.mxu0 0
    %536 = vmatprep.subr.bf16.mxu0 0
    %537 = vmatpush1.bf16.msra.mxu0 0
    %538 = vmatprep.subr.bf16.mxu0 0
    %539 = vmatpush1.bf16.msra.mxu0 0
    %540 = vmatprep.subr.bf16.mxu0 0
    %541 = vmatpush1.bf16.msra.mxu0 0
    %542 = vmatprep.subr.bf16.mxu0 0
    %543 = vmatpush1.bf16.msra.mxu0 0
    %544 = vmatprep.mubr.bf16.mxu0 0
    %545 = vmatmul.mubr.bf16.gmra.mrb[0].mxu0 %v198
    %v546 = vpop.f32.mrb[0].mxu0
    %v547 = vadd.f32 %v499, %v546
    %v548 = vpop.f32.mrb[0].mxu0
    %v549 = vpop.f32.mrb[0].mxu0
    %v550 = vadd.f32 %v499, %v549
    %v551 = vpop.f32.mrb[0].mxu0
    %552 = vdwg.mxu0
    %v553 = vmul.f32 %v365, %v547
    %v554 = vmul.f32 %v367, %v550
    %v555 = vadd.f32 %v490, %v553
    %v556 = vadd.f32 %v493, %v554
    %v557 = vtanh.pop %v555
    %v558 = vtanh.pop %v556
    %v559 = vsub.f32 1.0, %v436
    %v560 = vsub.f32 1.0, %v438
    %v561 = vmul.f32 %v559, %v557
    %v562 = vmul.f32 %v560, %v558
    %v563 = vmul.f32 %v436, %v89
    %v564 = vmul.f32 %v438, %v90
    %v565 = vadd.f32 %v561, %v563
    %v566 = vadd.f32 %v562, %v564
    %v567 = vpack.c.bf16 %v566, %v565
    %v569 = vsel %vm125, %v567, 0
    %571 = vmatprep.subr.bf16.mxu0 0
    %572 = vmatpush1.bf16.msra.mxu0 %v569
    %573 = vmatprep.subr.bf16.mxu0 0
    %574 = vmatpush1.bf16.msra.mxu0 0
    %575 = vmatprep.subr.bf16.mxu0 0
    %576 = vmatpush1.bf16.msra.mxu0 0
    %577 = vmatprep.subr.bf16.mxu0 0
    %578 = vmatpush1.bf16.msra.mxu0 0
    %579 = vmatprep.subr.bf16.mxu0 0
    %580 = vmatpush1.bf16.msra.mxu0 0
    %581 = vmatprep.subr.bf16.mxu0 0
    %582 = vmatpush1.bf16.msra.mxu0 0
    %583 = vmatprep.subr.bf16.mxu0 0
    %584 = vmatpush1.bf16.msra.mxu0 0
    %585 = vmatprep.subr.bf16.mxu0 0
    %586 = vmatpush1.bf16.msra.mxu0 0
    %587 = vmatprep.subr.bf16.mxu0 0
    %588 = vmatpush1.bf16.msra.mxu0 0
    %589 = vmatprep.subr.bf16.mxu0 0
    %590 = vmatpush1.bf16.msra.mxu0 0
    %591 = vmatprep.subr.bf16.mxu0 0
    %592 = vmatpush1.bf16.msra.mxu0 0
    %593 = vmatprep.subr.bf16.mxu0 0
    %594 = vmatpush1.bf16.msra.mxu0 0
    %595 = vmatprep.subr.bf16.mxu0 0
    %596 = vmatpush1.bf16.msra.mxu0 0
    %597 = vmatprep.subr.bf16.mxu0 0
    %598 = vmatpush1.bf16.msra.mxu0 0
    %599 = vmatprep.subr.bf16.mxu0 0
    %600 = vmatpush1.bf16.msra.mxu0 0
    %601 = vmatprep.subr.bf16.mxu0 0
    %602 = vmatpush1.bf16.msra.mxu0 0
    %603 = vmatprep.mubr.bf16.mxu0 0
    %604 = vmatmul.mubr.bf16.gmra.mrb[0].mxu0 %v123
    %v605 = vpop.f32.mrb[0].mxu0
    %v606 = vadd.f32 0.0, %v605
    %v607 = vpop.f32.mrb[0].mxu0
    %v608 = vpop.f32.mrb[0].mxu0
    %v609 = vadd.f32 0.0, %v608
    %v610 = vpop.f32.mrb[0].mxu0
    %611 = vdwg.mxu0
    %v612 = vpack.c.bf16 %v609, %v606
    %s613 = scalar_lea.vmem [#allocation5], 48
    %v614 = vld [vmem:[%s613] sm:$0xf]
    %v615 = vld [vmem:[%s613 + $0x4] sm:$0xf]
    %v616 = vld [vmem:[%s613 + $0x8] sm:$0xf]
    %v617 = vld [vmem:[%s613 + $0xc] sm:$0xf]
    %s618 = scalar_lea.vmem [#allocation5], 64
    %v619 = vld [vmem:[%s618] sm:$0xf]
    %v620 = vld [vmem:[%s618 + $0x4] sm:$0xf]
    %v621 = vld [vmem:[%s618 + $0x8] sm:$0xf]
    %v622 = vld [vmem:[%s618 + $0xc] sm:$0xf]
    %s623 = scalar_lea.vmem [#allocation5], 80
    %v624 = vld [vmem:[%s623] sm:$0xf]
    %v625 = vld [vmem:[%s623 + $0x4] sm:$0xf]
    %v626 = vld [vmem:[%s623 + $0x8] sm:$0xf]
    %v627 = vld [vmem:[%s623 + $0xc] sm:$0xf]
    %v628 = vsel %vm197, %v567, 0
    %630 = vmatprep.subr.bf16.mxu0 0
    %631 = vmatpush1.bf16.msra.mxu0 %v193
    %632 = vmatprep.subr.bf16.mxu0 0
    %633 = vmatpush1.bf16.msra.mxu0 %v194
    %634 = vmatprep.subr.bf16.mxu0 0
    %635 = vmatpush1.bf16.msra.mxu0 0
    %636 = vmatprep.subr.bf16.mxu0 0
    %637 = vmatpush1.bf16.msra.mxu0 0
    %638 = vmatprep.subr.bf16.mxu0 0
    %639 = vmatpush1.bf16.msra.mxu0 0
    %640 = vmatprep.subr.bf16.mxu0 0
    %641 = vmatpush1.bf16.msra.mxu0 0
    %642 = vmatprep.subr.bf16.mxu0 0
    %643 = vmatpush1.bf16.msra.mxu0 0
    %644 = vmatprep.subr.bf16.mxu0 0
    %645 = vmatpush1.bf16.msra.mxu0 0
    %646 = vmatprep.subr.bf16.mxu0 0
    %647 = vmatpush1.bf16.msra.mxu0 0
    %648 = vmatprep.subr.bf16.mxu0 0
    %649 = vmatpush1.bf16.msra.mxu0 0
    %650 = vmatprep.subr.bf16.mxu0 0
    %651 = vmatpush1.bf16.msra.mxu0 0
    %652 = vmatprep.subr.bf16.mxu0 0
    %653 = vmatpush1.bf16.msra.mxu0 0
    %654 = vmatprep.subr.bf16.mxu0 0
    %655 = vmatpush1.bf16.msra.mxu0 0
    %656 = vmatprep.subr.bf16.mxu0 0
    %657 = vmatpush1.bf16.msra.mxu0 0
    %658 = vmatprep.subr.bf16.mxu0 0
    %659 = vmatpush1.bf16.msra.mxu0 0
    %660 = vmatprep.subr.bf16.mxu0 0
    %661 = vmatpush1.bf16.msra.mxu0 0
    %662 = vmatprep.mubr.bf16.mxu0 0
    %663 = vmatmul.mubr.bf16.gmra.mrb[0].mxu0 %v628
    %v664 = vpop.f32.mrb[0].mxu0
    %v665 = vadd.f32 0.0, %v664
    %v666 = vpop.f32.mrb[0].mxu0
    %v667 = vpop.f32.mrb[0].mxu0
    %v668 = vadd.f32 0.0, %v667
    %v669 = vpop.f32.mrb[0].mxu0
    %670 = vdwg.mxu0
    %671 = vmatprep.subr.bf16.mxu0 0
    %672 = vmatpush1.bf16.msra.mxu0 %v249
    %673 = vmatprep.subr.bf16.mxu0 0
    %674 = vmatpush1.bf16.msra.mxu0 %v250
    %675 = vmatprep.subr.bf16.mxu0 0
    %676 = vmatpush1.bf16.msra.mxu0 0
    %677 = vmatprep.subr.bf16.mxu0 0
    %678 = vmatpush1.bf16.msra.mxu0 0
    %679 = vmatprep.subr.bf16.mxu0 0
    %680 = vmatpush1.bf16.msra.mxu0 0
    %681 = vmatprep.subr.bf16.mxu0 0
    %682 = vmatpush1.bf16.msra.mxu0 0
    %683 = vmatprep.subr.bf16.mxu0 0
    %684 = vmatpush1.bf16.msra.mxu0 0
    %685 = vmatprep.subr.bf16.mxu0 0
    %686 = vmatpush1.bf16.msra.mxu0 0
    %687 = vmatprep.subr.bf16.mxu0 0
    %688 = vmatpush1.bf16.msra.mxu0 0
    %689 = vmatprep.subr.bf16.mxu0 0
    %690 = vmatpush1.bf16.msra.mxu0 0
    %691 = vmatprep.subr.bf16.mxu0 0
    %692 = vmatpush1.bf16.msra.mxu0 0
    %693 = vmatprep.subr.bf16.mxu0 0
    %694 = vmatpush1.bf16.msra.mxu0 0
    %695 = vmatprep.subr.bf16.mxu0 0
    %696 = vmatpush1.bf16.msra.mxu0 0
    %697 = vmatprep.subr.bf16.mxu0 0
    %698 = vmatpush1.bf16.msra.mxu0 0
    %699 = vmatprep.subr.bf16.mxu0 0
    %700 = vmatpush1.bf16.msra.mxu0 0
    %701 = vmatprep.subr.bf16.mxu0 0
    %702 = vmatpush1.bf16.msra.mxu0 0
    %703 = vmatprep.mubr.bf16.mxu0 0
    %704 = vmatmul.mubr.bf16.gmra.mrb[0].mxu0 %v628
    %v705 = vpop.f32.mrb[0].mxu0
    %v706 = vadd.f32 0.0, %v705
    %v707 = vpop.f32.mrb[0].mxu0
    %v708 = vpop.f32.mrb[0].mxu0
    %v709 = vadd.f32 0.0, %v708
    %v710 = vpop.f32.mrb[0].mxu0
    %711 = vdwg.mxu0
    %v716 = vunpack.c.l.b16 %v614
    %v717 = vunpack.c.l.b16 %v615
    %v718 = vunpack.c.l.b16 %v616
    %v719 = vunpack.c.l.b16 %v617
    %v720 = vpack.c.b16 %v717, %v716
    %v721 = vpack.c.b16 %v719, %v718
    %v725 = vsel %vm197, %v612, 0
    %727 = vmatprep.subr.bf16.mxu0 0
    %728 = vmatpush1.bf16.msra.mxu0 %v720
    %729 = vmatprep.subr.bf16.mxu0 0
    %730 = vmatpush1.bf16.msra.mxu0 %v721
    %731 = vmatprep.subr.bf16.mxu0 0
    %732 = vmatpush1.bf16.msra.mxu0 0
    %733 = vmatprep.subr.bf16.mxu0 0
    %734 = vmatpush1.bf16.msra.mxu0 0
    %735 = vmatprep.subr.bf16.mxu0 0
    %736 = vmatpush1.bf16.msra.mxu0 0
    %737 = vmatprep.subr.bf16.mxu0 0
    %738 = vmatpush1.bf16.msra.mxu0 0
    %739 = vmatprep.subr.bf16.mxu0 0
    %740 = vmatpush1.bf16.msra.mxu0 0
    %741 = vmatprep.subr.bf16.mxu0 0
    %742 = vmatpush1.bf16.msra.mxu0 0
    %743 = vmatprep.subr.bf16.mxu0 0
    %744 = vmatpush1.bf16.msra.mxu0 0
    %745 = vmatprep.subr.bf16.mxu0 0
    %746 = vmatpush1.bf16.msra.mxu0 0
    %747 = vmatprep.subr.bf16.mxu0 0
    %748 = vmatpush1.bf16.msra.mxu0 0
    %749 = vmatprep.subr.bf16.mxu0 0
    %750 = vmatpush1.bf16.msra.mxu0 0
    %751 = vmatprep.subr.bf16.mxu0 0
    %752 = vmatpush1.bf16.msra.mxu0 0
    %753 = vmatprep.subr.bf16.mxu0 0
    %754 = vmatpush1.bf16.msra.mxu0 0
    %755 = vmatprep.subr.bf16.mxu0 0
    %756 = vmatpush1.bf16.msra.mxu0 0
    %757 = vmatprep.subr.bf16.mxu0 0
    %758 = vmatpush1.bf16.msra.mxu0 0
    %759 = vmatprep.mubr.bf16.mxu0 0
    %760 = vmatmul.mubr.bf16.gmra.mrb[0].mxu0 %v725
    %v761 = vpop.f32.mrb[0].mxu0
    %v762 = vadd.f32 %v665, %v761
    %v763 = vpop.f32.mrb[0].mxu0
    %v764 = vpop.f32.mrb[0].mxu0
    %v765 = vadd.f32 %v668, %v764
    %v766 = vpop.f32.mrb[0].mxu0
    %767 = vdwg.mxu0
    %v768 = vadd.f32 %v762, %v353
    %v769 = vadd.f32 %v765, %v353
    %v770 = vxor.u32 %v768, 2147483648
    %v771 = vxor.u32 %v769, 2147483648
    %v772 = vmul.f32 %v770, 1.442695
    %v773 = vpow.pop %v772
    %v774 = vmul.f32 %v771, 1.442695
    %v775 = vpow.pop %v774
    %v776 = vadd.f32 %v773, 1.0
    %v777 = vadd.f32 %v775, 1.0
    %v778 = vrcp.pop %v776
    %v779 = vmul.f32 1.0, %v778
    %v780 = vrcp.pop %v777
    %v781 = vmul.f32 1.0, %v780
    %v786 = vunpack.c.l.b16 %v619
    %v787 = vunpack.c.l.b16 %v620
    %v788 = vunpack.c.l.b16 %v621
    %v789 = vunpack.c.l.b16 %v622
    %v790 = vpack.c.b16 %v787, %v786
    %v791 = vpack.c.b16 %v789, %v788
    %794 = vmatprep.subr.bf16.mxu0 0
    %795 = vmatpush1.bf16.msra.mxu0 %v790
    %796 = vmatprep.subr.bf16.mxu0 0
    %797 = vmatpush1.bf16.msra.mxu0 %v791
    %798 = vmatprep.subr.bf16.mxu0 0
    %799 = vmatpush1.bf16.msra.mxu0 0
    %800 = vmatprep.subr.bf16.mxu0 0
    %801 = vmatpush1.bf16.msra.mxu0 0
    %802 = vmatprep.subr.bf16.mxu0 0
    %803 = vmatpush1.bf16.msra.mxu0 0
    %804 = vmatprep.subr.bf16.mxu0 0
    %805 = vmatpush1.bf16.msra.mxu0 0
    %806 = vmatprep.subr.bf16.mxu0 0
    %807 = vmatpush1.bf16.msra.mxu0 0
    %808 = vmatprep.subr.bf16.mxu0 0
    %809 = vmatpush1.bf16.msra.mxu0 0
    %810 = vmatprep.subr.bf16.mxu0 0
    %811 = vmatpush1.bf16.msra.mxu0 0
    %812 = vmatprep.subr.bf16.mxu0 0
    %813 = vmatpush1.bf16.msra.mxu0 0
    %814 = vmatprep.subr.bf16.mxu0 0
    %815 = vmatpush1.bf16.msra.mxu0 0
    %816 = vmatprep.subr.bf16.mxu0 0
    %817 = vmatpush1.bf16.msra.mxu0 0
    %818 = vmatprep.subr.bf16.mxu0 0
    %819 = vmatpush1.bf16.msra.mxu0 0
    %820 = vmatprep.subr.bf16.mxu0 0
    %821 = vmatpush1.bf16.msra.mxu0 0
    %822 = vmatprep.subr.bf16.mxu0 0
    %823 = vmatpush1.bf16.msra.mxu0 0
    %824 = vmatprep.subr.bf16.mxu0 0
    %825 = vmatpush1.bf16.msra.mxu0 0
    %826 = vmatprep.mubr.bf16.mxu0 0
    %827 = vmatmul.mubr.bf16.gmra.mrb[0].mxu0 %v725
    %v828 = vpop.f32.mrb[0].mxu0
    %v829 = vadd.f32 %v706, %v828
    %v830 = vpop.f32.mrb[0].mxu0
    %v831 = vpop.f32.mrb[0].mxu0
    %v832 = vadd.f32 %v709, %v831
    %v833 = vpop.f32.mrb[0].mxu0
    %834 = vdwg.mxu0
    %v835 = vadd.f32 %v829, %v424
    %v836 = vadd.f32 %v832, %v424
    %v837 = vxor.u32 %v835, 2147483648
    %v838 = vxor.u32 %v836, 2147483648
    %v839 = vmul.f32 %v837, 1.442695
    %v840 = vpow.pop %v839
    %v841 = vmul.f32 %v838, 1.442695
    %v842 = vpow.pop %v841
    %v843 = vadd.f32 %v840, 1.0
    %v844 = vadd.f32 %v842, 1.0
    %v845 = vrcp.pop %v843
    %v846 = vmul.f32 1.0, %v845
    %v847 = vrcp.pop %v844
    %v848 = vmul.f32 1.0, %v847
    %v853 = vunpack.c.l.b16 %v624
    %v854 = vunpack.c.l.b16 %v625
    %v855 = vunpack.c.l.b16 %v626
    %v856 = vunpack.c.l.b16 %v627
    %v857 = vpack.c.b16 %v854, %v853
    %v858 = vpack.c.b16 %v856, %v855
    %861 = vmatprep.subr.bf16.mxu0 0
    %862 = vmatpush1.bf16.msra.mxu0 %v857
    %863 = vmatprep.subr.bf16.mxu0 0
    %864 = vmatpush1.bf16.msra.mxu0 %v858
    %865 = vmatprep.subr.bf16.mxu0 0
    %866 = vmatpush1.bf16.msra.mxu0 0
    %867 = vmatprep.subr.bf16.mxu0 0
    %868 = vmatpush1.bf16.msra.mxu0 0
    %869 = vmatprep.subr.bf16.mxu0 0
    %870 = vmatpush1.bf16.msra.mxu0 0
    %871 = vmatprep.subr.bf16.mxu0 0
    %872 = vmatpush1.bf16.msra.mxu0 0
    %873 = vmatprep.subr.bf16.mxu0 0
    %874 = vmatpush1.bf16.msra.mxu0 0
    %875 = vmatprep.subr.bf16.mxu0 0
    %876 = vmatpush1.bf16.msra.mxu0 0
    %877 = vmatprep.subr.bf16.mxu0 0
    %878 = vmatpush1.bf16.msra.mxu0 0
    %879 = vmatprep.subr.bf16.mxu0 0
    %880 = vmatpush1.bf16.msra.mxu0 0
    %881 = vmatprep.subr.bf16.mxu0 0
    %882 = vmatpush1.bf16.msra.mxu0 0
    %883 = vmatprep.subr.bf16.mxu0 0
    %884 = vmatpush1.bf16.msra.mxu0 0
    %885 = vmatprep.subr.bf16.mxu0 0
    %886 = vmatpush1.bf16.msra.mxu0 0
    %887 = vmatprep.subr.bf16.mxu0 0
    %888 = vmatpush1.bf16.msra.mxu0 0
    %889 = vmatprep.subr.bf16.mxu0 0
    %890 = vmatpush1.bf16.msra.mxu0 0
    %891 = vmatprep.subr.bf16.mxu0 0
    %892 = vmatpush1.bf16.msra.mxu0 0
    %893 = vmatprep.mubr.bf16.mxu0 0
    %894 = vmatmul.mubr.bf16.gmra.mrb[0].mxu0 %v725
    %v895 = vpop.f32.mrb[0].mxu0
    %v896 = vadd.f32 %v442, %v895
    %v897 = vpop.f32.mrb[0].mxu0
    %v898 = vpop.f32.mrb[0].mxu0
    %v899 = vadd.f32 %v442, %v898
    %v900 = vpop.f32.mrb[0].mxu0
    %901 = vdwg.mxu0
    %902 = vmatprep.subr.bf16.mxu0 0
    %903 = vmatpush1.bf16.msra.mxu0 %v508
    %904 = vmatprep.subr.bf16.mxu0 0
    %905 = vmatpush1.bf16.msra.mxu0 %v509
    %906 = vmatprep.subr.bf16.mxu0 0
    %907 = vmatpush1.bf16.msra.mxu0 0
    %908 = vmatprep.subr.bf16.mxu0 0
    %909 = vmatpush1.bf16.msra.mxu0 0
    %910 = vmatprep.subr.bf16.mxu0 0
    %911 = vmatpush1.bf16.msra.mxu0 0
    %912 = vmatprep.subr.bf16.mxu0 0
    %913 = vmatpush1.bf16.msra.mxu0 0
    %914 = vmatprep.subr.bf16.mxu0 0
    %915 = vmatpush1.bf16.msra.mxu0 0
    %916 = vmatprep.subr.bf16.mxu0 0
    %917 = vmatpush1.bf16.msra.mxu0 0
    %918 = vmatprep.subr.bf16.mxu0 0
    %919 = vmatpush1.bf16.msra.mxu0 0
    %920 = vmatprep.subr.bf16.mxu0 0
    %921 = vmatpush1.bf16.msra.mxu0 0
    %922 = vmatprep.subr.bf16.mxu0 0
    %923 = vmatpush1.bf16.msra.mxu0 0
    %924 = vmatprep.subr.bf16.mxu0 0
    %925 = vmatpush1.bf16.msra.mxu0 0
    %926 = vmatprep.subr.bf16.mxu0 0
    %927 = vmatpush1.bf16.msra.mxu0 0
    %928 = vmatprep.subr.bf16.mxu0 0
    %929 = vmatpush1.bf16.msra.mxu0 0
    %930 = vmatprep.subr.bf16.mxu0 0
    %931 = vmatpush1.bf16.msra.mxu0 0
    %932 = vmatprep.subr.bf16.mxu0 0
    %933 = vmatpush1.bf16.msra.mxu0 0
    %934 = vmatprep.mubr.bf16.mxu0 0
    %935 = vmatmul.mubr.bf16.gmra.mrb[0].mxu0 %v628
    %v936 = vpop.f32.mrb[0].mxu0
    %v937 = vadd.f32 %v499, %v936
    %v938 = vpop.f32.mrb[0].mxu0
    %v939 = vpop.f32.mrb[0].mxu0
    %v940 = vadd.f32 %v499, %v939
    %v941 = vpop.f32.mrb[0].mxu0
    %942 = vdwg.mxu0
    %v943 = vmul.f32 %v779, %v937
    %v944 = vmul.f32 %v781, %v940
    %v945 = vadd.f32 %v896, %v943
    %v946 = vadd.f32 %v899, %v944
    %v947 = vtanh.pop %v945
    %v948 = vtanh.pop %v946
    %v949 = vsub.f32 1.0, %v846
    %v950 = vsub.f32 1.0, %v848
    %v951 = vmul.f32 %v949, %v947
    %v952 = vmul.f32 %v950, %v948
    %v953 = vmul.f32 %v846, %v565
    %v954 = vmul.f32 %v848, %v566
    %v955 = vadd.f32 %v951, %v953
    %v956 = vadd.f32 %v952, %v954
    %v957 = vmax.f32 %v955, 0.0
    %v958 = vmax.f32 %v956, 0.0
    %v959 = vpack.c.bf16 %v958, %v957
    %v960 = vld [vmem:[%s4] sm:$0x1]
    %v962 = vsel %vm121, %v960, 0
    %v965 = vsel %vm125, %v959, 0
    %967 = vmatprep.subr.bf16.mxu0 0
    %968 = vmatpush1.bf16.msra.mxu0 %v965
    %969 = vmatprep.subr.bf16.mxu0 0
    %970 = vmatpush1.bf16.msra.mxu0 0
    %971 = vmatprep.subr.bf16.mxu0 0
    %972 = vmatpush1.bf16.msra.mxu0 0
    %973 = vmatprep.subr.bf16.mxu0 0
    %974 = vmatpush1.bf16.msra.mxu0 0
    %975 = vmatprep.subr.bf16.mxu0 0
    %976 = vmatpush1.bf16.msra.mxu0 0
    %977 = vmatprep.subr.bf16.mxu0 0
    %978 = vmatpush1.bf16.msra.mxu0 0
    %979 = vmatprep.subr.bf16.mxu0 0
    %980 = vmatpush1.bf16.msra.mxu0 0
    %981 = vmatprep.subr.bf16.mxu0 0
    %982 = vmatpush1.bf16.msra.mxu0 0
    %983 = vmatprep.subr.bf16.mxu0 0
    %984 = vmatpush1.bf16.msra.mxu0 0
    %985 = vmatprep.subr.bf16.mxu0 0
    %986 = vmatpush1.bf16.msra.mxu0 0
    %987 = vmatprep.subr.bf16.mxu0 0
    %988 = vmatpush1.bf16.msra.mxu0 0
    %989 = vmatprep.subr.bf16.mxu0 0
    %990 = vmatpush1.bf16.msra.mxu0 0
    %991 = vmatprep.subr.bf16.mxu0 0
    %992 = vmatpush1.bf16.msra.mxu0 0
    %993 = vmatprep.subr.bf16.mxu0 0
    %994 = vmatpush1.bf16.msra.mxu0 0
    %995 = vmatprep.subr.bf16.mxu0 0
    %996 = vmatpush1.bf16.msra.mxu0 0
    %997 = vmatprep.subr.bf16.mxu0 0
    %998 = vmatpush1.bf16.msra.mxu0 0
    %999 = vmatprep.mubr.bf16.mxu0 0
    %1000 = vmatmul.mubr.bf16.gmra.mrb[0].mxu0 %v962
    %v1001 = vpop.f32.mrb[0].mxu0
    %v1002 = vadd.f32 0.0, %v1001
    %v1003 = vpop.f32.mrb[0].mxu0
    %v1004 = vpop.f32.mrb[0].mxu0
    %v1005 = vpop.f32.mrb[0].mxu0
    %1006 = vdwg.mxu0
    %v1007 = vpack.c.bf16 %v1002, %v1002
    %v1008 = vld [vmem:[#allocation8] sm:$0xf]
    %v1009 = vld [vmem:[#allocation8 + $0x4] sm:$0xf]
    %v1010 = vld [vmem:[#allocation8 + $0x8] sm:$0xf]
    %v1011 = vld [vmem:[#allocation8 + $0xc] sm:$0xf]
    %v1016 = vunpack.c.l.b16 %v1008
    %v1017 = vunpack.c.l.b16 %v1009
    %v1018 = vunpack.c.l.b16 %v1010
    %v1019 = vunpack.c.l.b16 %v1011
    %v1020 = vpack.c.b16 %v1017, %v1016
    %v1021 = vpack.c.b16 %v1019, %v1018
    %v1025 = vsel %vm197, %v1007, 0
    %1027 = vmatprep.subr.bf16.mxu0 0
    %1028 = vmatpush1.bf16.msra.mxu0 %v1020
    %1029 = vmatprep.subr.bf16.mxu0 0
    %1030 = vmatpush1.bf16.msra.mxu0 %v1021
    %1031 = vmatprep.subr.bf16.mxu0 0
    %1032 = vmatpush1.bf16.msra.mxu0 0
    %1033 = vmatprep.subr.bf16.mxu0 0
    %1034 = vmatpush1.bf16.msra.mxu0 0
    %1035 = vmatprep.subr.bf16.mxu0 0
    %1036 = vmatpush1.bf16.msra.mxu0 0
    %1037 = vmatprep.subr.bf16.mxu0 0
    %1038 = vmatpush1.bf16.msra.mxu0 0
    %1039 = vmatprep.subr.bf16.mxu0 0
    %1040 = vmatpush1.bf16.msra.mxu0 0
    %1041 = vmatprep.subr.bf16.mxu0 0
    %1042 = vmatpush1.bf16.msra.mxu0 0
    %1043 = vmatprep.subr.bf16.mxu0 0
    %1044 = vmatpush1.bf16.msra.mxu0 0
    %1045 = vmatprep.subr.bf16.mxu0 0
    %1046 = vmatpush1.bf16.msra.mxu0 0
    %1047 = vmatprep.subr.bf16.mxu0 0
    %1048 = vmatpush1.bf16.msra.mxu0 0
    %1049 = vmatprep.subr.bf16.mxu0 0
    %1050 = vmatpush1.bf16.msra.mxu0 0
    %1051 = vmatprep.subr.bf16.mxu0 0
    %1052 = vmatpush1.bf16.msra.mxu0 0
    %1053 = vmatprep.subr.bf16.mxu0 0
    %1054 = vmatpush1.bf16.msra.mxu0 0
    %1055 = vmatprep.subr.bf16.mxu0 0
    %1056 = vmatpush1.bf16.msra.mxu0 0
    %1057 = vmatprep.subr.bf16.mxu0 0
    %1058 = vmatpush1.bf16.msra.mxu0 0
    %1059 = vmatprep.mubr.bf16.mxu0 0
    %1060 = vmatmul.mubr.bf16.gmra.mrb[0].mxu0 %v1025
    %v1061 = vpop.f32.mrb[0].mxu0
    %v1062 = vadd.f32 0.0, %v1061
    %v1063 = vpop.f32.mrb[0].mxu0
    %v1064 = vpop.f32.mrb[0].mxu0
    %v1065 = vpop.f32.mrb[0].mxu0
    %1066 = vdwg.mxu0
    %v1067 = vpack.c.bf16 %v1062, %v1062
    %v1068 = vld [vmem:[%s2] sm:$0xf]
    %v1069 = vld [vmem:[%s2 + $0x4] sm:$0x1]
    %s1070 = scalar_lea.vmem [#allocation8], 16
    %v1071 = vld [vmem:[%s1070] sm:$0xf]
    %v1072 = vld [vmem:[%s1070 + $0x4] sm:$0xf]
    %v1073 = vld [vmem:[%s1070 + $0x8] sm:$0xf]
    %v1074 = vld [vmem:[%s1070 + $0xc] sm:$0xf]
    %v1079 = vunpack.c.l.b16 %v1071
    %v1080 = vunpack.c.l.b16 %v1072
    %v1081 = vunpack.c.l.b16 %v1073
    %v1082 = vunpack.c.l.b16 %v1074
    %v1083 = vpack.c.b16 %v1080, %v1079
    %v1084 = vpack.c.b16 %v1082, %v1081
    %v1087 = vsel %vm197, %v959, 0
    %1089 = vmatprep.subr.bf16.mxu0 0
    %1090 = vmatpush1.bf16.msra.mxu0 %v1083
    %1091 = vmatprep.subr.bf16.mxu0 0
    %1092 = vmatpush1.bf16.msra.mxu0 %v1084
    %1093 = vmatprep.subr.bf16.mxu0 0
    %1094 = vmatpush1.bf16.msra.mxu0 0
    %1095 = vmatprep.subr.bf16.mxu0 0
    %1096 = vmatpush1.bf16.msra.mxu0 0
    %1097 = vmatprep.subr.bf16.mxu0 0
    %1098 = vmatpush1.bf16.msra.mxu0 0
    %1099 = vmatprep.subr.bf16.mxu0 0
    %1100 = vmatpush1.bf16.msra.mxu0 0
    %1101 = vmatprep.subr.bf16.mxu0 0
    %1102 = vmatpush1.bf16.msra.mxu0 0
    %1103 = vmatprep.subr.bf16.mxu0 0
    %1104 = vmatpush1.bf16.msra.mxu0 0
    %1105 = vmatprep.subr.bf16.mxu0 0
    %1106 = vmatpush1.bf16.msra.mxu0 0
    %1107 = vmatprep.subr.bf16.mxu0 0
    %1108 = vmatpush1.bf16.msra.mxu0 0
    %1109 = vmatprep.subr.bf16.mxu0 0
    %1110 = vmatpush1.bf16.msra.mxu0 0
    %1111 = vmatprep.subr.bf16.mxu0 0
    %1112 = vmatpush1.bf16.msra.mxu0 0
    %1113 = vmatprep.subr.bf16.mxu0 0
    %1114 = vmatpush1.bf16.msra.mxu0 0
    %1115 = vmatprep.subr.bf16.mxu0 0
    %1116 = vmatpush1.bf16.msra.mxu0 0
    %1117 = vmatprep.subr.bf16.mxu0 0
    %1118 = vmatpush1.bf16.msra.mxu0 0
    %1119 = vmatprep.subr.bf16.mxu0 0
    %1120 = vmatpush1.bf16.msra.mxu0 0
    %1121 = vmatprep.mubr.bf16.mxu0 0
    %1122 = vmatmul.mubr.bf16.gmra.mrb[0].mxu0 %v1087
    %v1123 = vpop.f32.mrb[0].mxu0
    %v1124 = vadd.f32 0.0, %v1123
    %v1125 = vpop.f32.mrb[0].mxu0
    %v1126 = vpop.f32.mrb[0].mxu0
    %v1127 = vadd.f32 0.0, %v1126
    %v1128 = vpop.f32.mrb[0].mxu0
    %1129 = vdwg.mxu0
    %v1132 = vunpack.c.l.b16 %v1068
    %v1133 = vunpack.c.l.b16 %v1069
    %v1134 = vpack.c.b16 %v1133, %v1132
    %vm1135 = vcmask 15360
    %v1137 = vsel %vm1135, %v1134, 0
    %vm1139 = vcmask 1040384
    %v1141 = vsel %vm1139, %v1067, 0
    %1143 = vmatprep.subr.bf16.mxu0 0
    %1144 = vmatpush1.bf16.msra.mxu0 %v1141
    %1145 = vmatprep.subr.bf16.mxu0 0
    %1146 = vmatpush1.bf16.msra.mxu0 0
    %1147 = vmatprep.subr.bf16.mxu0 0
    %1148 = vmatpush1.bf16.msra.mxu0 0
    %1149 = vmatprep.subr.bf16.mxu0 0
    %1150 = vmatpush1.bf16.msra.mxu0 0
    %1151 = vmatprep.subr.bf16.mxu0 0
    %1152 = vmatpush1.bf16.msra.mxu0 0
    %1153 = vmatprep.subr.bf16.mxu0 0
    %1154 = vmatpush1.bf16.msra.mxu0 0
    %1155 = vmatprep.subr.bf16.mxu0 0
    %1156 = vmatpush1.bf16.msra.mxu0 0
    %1157 = vmatprep.subr.bf16.mxu0 0
    %1158 = vmatpush1.bf16.msra.mxu0 0
    %1159 = vmatprep.subr.bf16.mxu0 0
    %1160 = vmatpush1.bf16.msra.mxu0 0
    %1161 = vmatprep.subr.bf16.mxu0 0
    %1162 = vmatpush1.bf16.msra.mxu0 0
    %1163 = vmatprep.subr.bf16.mxu0 0
    %1164 = vmatpush1.bf16.msra.mxu0 0
    %1165 = vmatprep.subr.bf16.mxu0 0
    %1166 = vmatpush1.bf16.msra.mxu0 0
    %1167 = vmatprep.subr.bf16.mxu0 0
    %1168 = vmatpush1.bf16.msra.mxu0 0
    %1169 = vmatprep.subr.bf16.mxu0 0
    %1170 = vmatpush1.bf16.msra.mxu0 0
    %1171 = vmatprep.subr.bf16.mxu0 0
    %1172 = vmatpush1.bf16.msra.mxu0 0
    %1173 = vmatprep.subr.bf16.mxu0 0
    %1174 = vmatpush1.bf16.msra.mxu0 0
    %1175 = vmatprep.mubr.bf16.mxu0 0
    %1176 = vmatmul.mubr.bf16.gmra.mrb[0].mxu0 %v1137
    %v1177 = vpop.f32.mrb[0].mxu0
    %v1178 = vadd.f32 %v1124, %v1177
    %v1179 = vpop.f32.mrb[0].mxu0
    %v1180 = vpop.f32.mrb[0].mxu0
    %v1181 = vadd.f32 %v1127, %v1180
    %v1182 = vpop.f32.mrb[0].mxu0
    %1183 = vdwg.mxu0
    %v1184 = vlaneseq
    %v1185 = vshrl.u32 %v1184, 7
    %v1186 = vsub.s32 0, %v1185
    %v1187 = vrot.slane %v97, %v1186
    %v1188 = vadd.f32 %v1178, %v1187
    %v1189 = vadd.f32 %v1181, %v1187
    %v1190 = vxor.u32 %v1188, 2147483648
    %v1191 = vxor.u32 %v1189, 2147483648
    %v1192 = vmul.f32 %v1190, 1.442695
    %v1193 = vpow.pop %v1192
    %v1194 = vmul.f32 %v1191, 1.442695
    %v1195 = vpow.pop %v1194
    %v1196 = vadd.f32 %v1193, 1.0
    %v1197 = vadd.f32 %v1195, 1.0
    %v1198 = vrcp.pop %v1196
    %v1199 = vmul.f32 1.0, %v1198
    %v1200 = vrcp.pop %v1197
    %v1201 = vmul.f32 1.0, %v1200
    %v1202 = vlaneseq
    %v1203 = vshrl.u32 %v1202, 7
    %v1204 = vsub.s32 0, %v1203
    %v1205 = vrot.slane %v98, %v1204
    %v1206 = vmul.f32 %v1199, %v1205
    %v1207 = vmul.f32 %v1201, %v1205
    %v1208 = vsel %vm197, %v1206, 0.0
    %1209 = vadd.xlane.f32.xlu0 %v1208
    %v1210 = vpop.xlane.xlu0 %1209
    %vm1211 = vcmask 254976
    %v1212 = vsel %vm1211, %v1207, 0.0
    %1213 = vadd.xlane.f32.xlu0 %v1212
    %v1214 = vpop.xlane.xlu0 %1213
    %v1215 = vlaneseq
    %v1216 = vshrl.u32 %v1215, 7
    %v1217 = vsub.s32 0, %v1216
    %v1218 = vrot.slane %v100, %v1217
    %v1219 = vadd.f32 %v1210, %v1218
    %v1220 = vadd.f32 %v1214, %v1218
    %v1221 = vld [vmem:[%s3] sm:$0x1]
    %1223 = vset.pattern.permute.xlu0 0
    %1224 = vperm.xlu0 %1223, %v1219
    %v1225 = vpop.permute.xlu0 %1224
    %1228 = vset.pattern.permute.xlu0 0
    %1229 = vperm.xlu0 %1228, %v1220
    %v1230 = vpop.permute.xlu0 %1229
    %v1232 = vmul.f32 %v1225, %v957
    %v1233 = vmul.f32 %v1230, %v958
    %v1234 = vpack.c.bf16 %v1233, %v1232
    %v1236 = vsel %vm121, %v1221, 0
    %v1239 = vsel %vm125, %v1234, 0
    %1241 = vmatprep.subr.bf16.mxu0 0
    %1242 = vmatpush1.bf16.msra.mxu0 %v1239
    %1243 = vmatprep.subr.bf16.mxu0 0
    %1244 = vmatpush1.bf16.msra.mxu0 0
    %1245 = vmatprep.subr.bf16.mxu0 0
    %1246 = vmatpush1.bf16.msra.mxu0 0
    %1247 = vmatprep.subr.bf16.mxu0 0
    %1248 = vmatpush1.bf16.msra.mxu0 0
    %1249 = vmatprep.subr.bf16.mxu0 0
    %1250 = vmatpush1.bf16.msra.mxu0 0
    %1251 = vmatprep.subr.bf16.mxu0 0
    %1252 = vmatpush1.bf16.msra.mxu0 0
    %1253 = vmatprep.subr.bf16.mxu0 0
    %1254 = vmatpush1.bf16.msra.mxu0 0
    %1255 = vmatprep.subr.bf16.mxu0 0
    %1256 = vmatpush1.bf16.msra.mxu0 0
    %1257 = vmatprep.subr.bf16.mxu0 0
    %1258 = vmatpush1.bf16.msra.mxu0 0
    %1259 = vmatprep.subr.bf16.mxu0 0
    %1260 = vmatpush1.bf16.msra.mxu0 0
    %1261 = vmatprep.subr.bf16.mxu0 0
    %1262 = vmatpush1.bf16.msra.mxu0 0
    %1263 = vmatprep.subr.bf16.mxu0 0
    %1264 = vmatpush1.bf16.msra.mxu0 0
    %1265 = vmatprep.subr.bf16.mxu0 0
    %1266 = vmatpush1.bf16.msra.mxu0 0
    %1267 = vmatprep.subr.bf16.mxu0 0
    %1268 = vmatpush1.bf16.msra.mxu0 0
    %1269 = vmatprep.subr.bf16.mxu0 0
    %1270 = vmatpush1.bf16.msra.mxu0 0
    %1271 = vmatprep.subr.bf16.mxu0 0
    %1272 = vmatpush1.bf16.msra.mxu0 0
    %1273 = vmatprep.mubr.bf16.mxu0 0
    %1274 = vmatmul.mubr.bf16.gmra.mrb[0].mxu0 %v1236
    %v1275 = vpop.f32.mrb[0].mxu0
    %v1276 = vadd.f32 0.0, %v1275
    %v1277 = vpop.f32.mrb[0].mxu0
    %v1278 = vpop.f32.mrb[0].mxu0
    %v1279 = vpop.f32.mrb[0].mxu0
    %1280 = vdwg.mxu0
    %s1281 = scalar_lea.vmem [#allocation8], 32
    %v1282 = vld [vmem:[%s1281] sm:$0xf]
    %v1283 = vld [vmem:[%s1281 + $0x4] sm:$0xf]
    %v1284 = vld [vmem:[%s1281 + $0x8] sm:$0xf]
    %v1285 = vld [vmem:[%s1281 + $0xc] sm:$0xf]
    %v1286 = vpack.c.bf16 %v1276, %v1276
    %s1287 = scalar_lea.vmem [#allocation8], 48
    %v1288 = vld [vmem:[%s1287] sm:$0xf]
    %v1289 = vld [vmem:[%s1287 + $0x4] sm:$0xf]
    %v1290 = vld [vmem:[%s1287 + $0x8] sm:$0xf]
    %v1291 = vld [vmem:[%s1287 + $0xc] sm:$0xf]
    %v1296 = vunpack.c.l.b16 %v1288
    %v1297 = vunpack.c.l.b16 %v1289
    %v1298 = vunpack.c.l.b16 %v1290
    %v1299 = vunpack.c.l.b16 %v1291
    %v1300 = vpack.c.b16 %v1297, %v1296
    %v1301 = vpack.c.b16 %v1299, %v1298
    %v1305 = vsel %vm197, %v1286, 0
    %1307 = vmatprep.subr.bf16.mxu0 0
    %1308 = vmatpush1.bf16.msra.mxu0 %v1300
    %1309 = vmatprep.subr.bf16.mxu0 0
    %1310 = vmatpush1.bf16.msra.mxu0 %v1301
    %1311 = vmatprep.subr.bf16.mxu0 0
    %1312 = vmatpush1.bf16.msra.mxu0 0
    %1313 = vmatprep.subr.bf16.mxu0 0
    %1314 = vmatpush1.bf16.msra.mxu0 0
    %1315 = vmatprep.subr.bf16.mxu0 0
    %1316 = vmatpush1.bf16.msra.mxu0 0
    %1317 = vmatprep.subr.bf16.mxu0 0
    %1318 = vmatpush1.bf16.msra.mxu0 0
    %1319 = vmatprep.subr.bf16.mxu0 0
    %1320 = vmatpush1.bf16.msra.mxu0 0
    %1321 = vmatprep.subr.bf16.mxu0 0
    %1322 = vmatpush1.bf16.msra.mxu0 0
    %1323 = vmatprep.subr.bf16.mxu0 0
    %1324 = vmatpush1.bf16.msra.mxu0 0
    %1325 = vmatprep.subr.bf16.mxu0 0
    %1326 = vmatpush1.bf16.msra.mxu0 0
    %1327 = vmatprep.subr.bf16.mxu0 0
    %1328 = vmatpush1.bf16.msra.mxu0 0
    %1329 = vmatprep.subr.bf16.mxu0 0
    %1330 = vmatpush1.bf16.msra.mxu0 0
    %1331 = vmatprep.subr.bf16.mxu0 0
    %1332 = vmatpush1.bf16.msra.mxu0 0
    %1333 = vmatprep.subr.bf16.mxu0 0
    %1334 = vmatpush1.bf16.msra.mxu0 0
    %1335 = vmatprep.subr.bf16.mxu0 0
    %1336 = vmatpush1.bf16.msra.mxu0 0
    %1337 = vmatprep.subr.bf16.mxu0 0
    %1338 = vmatpush1.bf16.msra.mxu0 0
    %1339 = vmatprep.mubr.bf16.mxu0 0
    %1340 = vmatmul.mubr.bf16.gmra.mrb[0].mxu0 %v1305
    %v1341 = vpop.f32.mrb[0].mxu0
    %v1342 = vadd.f32 0.0, %v1341
    %v1343 = vpop.f32.mrb[0].mxu0
    %v1344 = vpop.f32.mrb[0].mxu0
    %v1345 = vpop.f32.mrb[0].mxu0
    %1346 = vdwg.mxu0
    %v1351 = vunpack.c.l.b16 %v1282
    %v1352 = vunpack.c.l.b16 %v1283
    %v1353 = vunpack.c.l.b16 %v1284
    %v1354 = vunpack.c.l.b16 %v1285
    %v1355 = vpack.c.b16 %v1352, %v1351
    %v1356 = vpack.c.b16 %v1354, %v1353
    %1359 = vmatprep.subr.bf16.mxu0 0
    %1360 = vmatpush1.bf16.msra.mxu0 %v1355
    %1361 = vmatprep.subr.bf16.mxu0 0
    %1362 = vmatpush1.bf16.msra.mxu0 %v1356
    %1363 = vmatprep.subr.bf16.mxu0 0
    %1364 = vmatpush1.bf16.msra.mxu0 0
    %1365 = vmatprep.subr.bf16.mxu0 0
    %1366 = vmatpush1.bf16.msra.mxu0 0
    %1367 = vmatprep.subr.bf16.mxu0 0
    %1368 = vmatpush1.bf16.msra.mxu0 0
    %1369 = vmatprep.subr.bf16.mxu0 0
    %1370 = vmatpush1.bf16.msra.mxu0 0
    %1371 = vmatprep.subr.bf16.mxu0 0
    %1372 = vmatpush1.bf16.msra.mxu0 0
    %1373 = vmatprep.subr.bf16.mxu0 0
    %1374 = vmatpush1.bf16.msra.mxu0 0
    %1375 = vmatprep.subr.bf16.mxu0 0
    %1376 = vmatpush1.bf16.msra.mxu0 0
    %1377 = vmatprep.subr.bf16.mxu0 0
    %1378 = vmatpush1.bf16.msra.mxu0 0
    %1379 = vmatprep.subr.bf16.mxu0 0
    %1380 = vmatpush1.bf16.msra.mxu0 0
    %1381 = vmatprep.subr.bf16.mxu0 0
    %1382 = vmatpush1.bf16.msra.mxu0 0
    %1383 = vmatprep.subr.bf16.mxu0 0
    %1384 = vmatpush1.bf16.msra.mxu0 0
    %1385 = vmatprep.subr.bf16.mxu0 0
    %1386 = vmatpush1.bf16.msra.mxu0 0
    %1387 = vmatprep.subr.bf16.mxu0 0
    %1388 = vmatpush1.bf16.msra.mxu0 0
    %1389 = vmatprep.subr.bf16.mxu0 0
    %1390 = vmatpush1.bf16.msra.mxu0 0
    %1391 = vmatprep.mubr.bf16.mxu0 0
    %1392 = vmatmul.mubr.bf16.gmra.mrb[0].mxu0 %v1025
    %v1393 = vpop.f32.mrb[0].mxu0
    %v1394 = vadd.f32 %v1342, %v1393
    %v1395 = vpop.f32.mrb[0].mxu0
    %v1396 = vpop.f32.mrb[0].mxu0
    %v1397 = vpop.f32.mrb[0].mxu0
    %1398 = vdwg.mxu0
    %v1399 = vlaneseq
    %v1400 = vshrl.u32 %v1399, 7
    %v1401 = vsub.s32 0, %v1400
    %v1402 = vrot.slane %v99, %v1401
    %v1403 = vadd.f32 %v1394, %v1402
    %1404 = vst.msk [vmem:[#allocation10] sm:$0x3] %vm1211, %v1403
    // Predicated region
    $region54: #{tpu_custom_call.1} parent=1 // pred_check
      _
    $region55: #{tpu_custom_call.1} parent=1 // pred_check_branch
      %1406 = sbr.rel (0) target = $region57
    $region56: #{tpu_custom_call.1} parent=1 // pred_region
      %s1408 = ssub.s32 32, 32
      %1409 = vsyncadd [#allocation4], %s1408
      %s1411 = sshll.u32 [#allocation10], 4
      %s1412 = int_to_ptr.vmem [resolvable:$true] %s1411
      %1414 = dma.vmem_to_hbm [thread:$0]  %s1412, 32, %s9, [#allocation4]
    $region57: #{tpu_custom_call.1} parent=1 // pred_fallthru
      _
    // Predicated region
    $region58: #{tpu_custom_call.1} parent=1 // pred_check
      _
    $region59: #{tpu_custom_call.1} parent=1 // pred_check_branch
      %1416 = sbr.rel (0) target = $region61
    $region60: #{tpu_custom_call.1} parent=1 // pred_region
      %1417 = dma.done [#allocation4], 32
    $region61: #{tpu_custom_call.1} parent=1 // pred_fallthru
      _
    %1418 = vsyncpa [#allocation3], 1
    %1419 = vsyncpa [#allocation6], 1
    %1420 = vsyncpa [#allocation9], 1
    %1421 = vsyncpa [#allocation4], 1

</llo_original>
